<compile_context>
chip_gen: v6e
topology: v6e:2x2x1
jax: 0.10.0
libtpu: 0.0.40
codegen_flags: <defaults>
</compile_context>

<pallas_src>
import numpy as np
import jax
import jax.numpy as jnp
from jax.experimental import pallas as pl
from jax.experimental.pallas import tpu as pltpu


def _round_up(x, m):
    return ((x + m - 1) // m) * m


def _cdiv(a, b):
    return -(-a // b)


# -----------------------------------------------------------------------------
# Deterministic parameter construction (mirrors torch / torchaudio formulas)
# -----------------------------------------------------------------------------
def hann_window(win):
    n = np.arange(win, dtype=np.float64)
    return 0.5 - 0.5 * np.cos(2.0 * np.pi * n / win)            # periodic Hann


def dft_matrices(n_fft, n_freq):
    n = np.arange(n_fft, dtype=np.float64)[:, None]
    k = np.arange(n_freq, dtype=np.float64)[None, :]
    ang = 2.0 * np.pi * n * k / n_fft
    return np.cos(ang), -np.sin(ang)                            # real / imag of e^{-i.}


def melscale_fbanks(n_freqs, n_mels, sample_rate):
    # torchaudio.functional.melscale_fbanks, HTK scale, norm=None
    def hz_to_mel(f):
        return 2595.0 * np.log10(1.0 + f / 700.0)

    def mel_to_hz(m):
        return 700.0 * (10.0 ** (m / 2595.0) - 1.0)

    f_min, f_max = 0.0, float(sample_rate // 2)
    all_freqs = np.linspace(0.0, sample_rate // 2, n_freqs)
    m_pts = np.linspace(hz_to_mel(f_min), hz_to_mel(f_max), n_mels + 2)
    f_pts = mel_to_hz(m_pts)
    f_diff = f_pts[1:] - f_pts[:-1]
    slopes = f_pts[None, :] - all_freqs[:, None]
    down = (-1.0 * slopes[:, :-2]) / f_diff[:-1]
    up = slopes[:, 2:] / f_diff[1:]
    return np.maximum(0.0, np.minimum(down, up))                # (n_freqs, n_mels) f64


def create_dct(n_mfcc, n_mels):
    # torchaudio.functional.create_dct(norm='ortho') -> (n_mels, n_mfcc)
    n = np.arange(n_mels, dtype=np.float64)
    k = np.arange(n_mfcc, dtype=np.float64)[:, None]
    dct = np.cos(np.pi / n_mels * (n + 0.5) * k)
    dct[0] *= 1.0 / np.sqrt(2.0)
    dct *= np.sqrt(2.0 / n_mels)
    return dct.T                                                # (n_mels, n_mfcc) f64


def build_constants(sample_rate, n_fft, hop, n_freq, n_mels, n_mfcc, n_mels_mfcc=128):
    """Window-folded, hop-blocked, lane-packed constants for the fused kernel."""
    n_freq_pad = _round_up(n_freq, 128)                         # 201 -> 256
    nbpf = _cdiv(n_fft, hop)                                    # hop blocks per frame (3)
    k_pad = nbpf * hop                                          # 480; rows >= n_fft are 0

    window = hann_window(n_fft)[:, None]
    cos_m, sin_m = dft_matrices(n_fft, n_freq)
    # Fused windowed DFT basis: [win*cos | 0pad | win*sin | 0pad] -> (k_pad, 512).
    wcs = np.zeros((k_pad, 2 * n_freq_pad), np.float32)
    wcs[:n_fft, :n_freq] = (window * cos_m).astype(np.float32)
    wcs[:n_fft, n_freq_pad:n_freq_pad + n_freq] = (window * sin_m).astype(np.float32)

    # One fused mel constant (review #2):
    #   lanes [0:n_mels]     mel(n_mels) bank for the packed small output
    #   lanes [n_mels:128]   zero (those output lanes are later filled by the DCT)
    #   lanes [128:256]      mel(128) bank feeding the MFCC log-mel path
    assert n_mels + n_mfcc <= 128 and n_mels_mfcc <= 128
    melfused = np.zeros((n_freq_pad, 256), np.float32)
    melfused[:n_freq, :n_mels] = melscale_fbanks(n_freq, n_mels, sample_rate)
    melfused[:n_freq, 128:128 + n_mels_mfcc] = melscale_fbanks(n_freq, n_mels_mfcc,
                                                               sample_rate)

    # DCT packed into lanes [n_mels : n_mels+n_mfcc] of the 128-wide small output.
    dct = np.zeros((128, 128), np.float32)
    dct[:n_mels_mfcc, n_mels:n_mels + n_mfcc] = create_dct(n_mfcc, n_mels_mfcc)
    return wcs, melfused, dct, n_freq_pad, nbpf


# -----------------------------------------------------------------------------
# Pallas kernel: hop-block windowed DFT -> power -> fused mel -> packed mel|mfcc
# -----------------------------------------------------------------------------
def _make_kernel(write_spec):
    def kernel(x_ref, h_ref, w_ref, mel_ref, dct_ref, *out_refs):
        tf, hop = x_ref.shape
        nbpf = w_ref.shape[0] // hop                            # hop blocks / frame (3)
        fp2 = w_ref.shape[1]                                    # 2 * padded n_freq (512)
        fp = fp2 // 2
        cd = w_ref.dtype                                        # f32 or bf16 compute

        # Frames are never materialized: DFT is decomposed into nbpf hop-block
        # matmuls over sublane-shifted views of [tile blocks | halo].
        xall = jnp.concatenate([x_ref[...], h_ref[...]], axis=0)    # (tf+nbpf-1, hop)
        w = w_ref[...]
        spec = jnp.zeros((tf, fp2), jnp.float32)
        for b in range(nbpf):                                   # static unroll (3)
            spec = spec + jnp.dot(xall[b:b + tf].astype(cd),
                                  w[b * hop:(b + 1) * hop, :],
                                  preferred_element_type=jnp.float32)
        real = spec[:, :fp]
        imag = spec[:, fp:]
        power = real * real + imag * imag                       # magphase(power=2)

        # One fused mel matmul; lanes [0:128] = packed mel40 path, [128:256] = mel128.
        pm = jnp.dot(power.astype(cd), mel_ref[...], preferred_element_type=jnp.float32)
        logmel = jnp.log(pm[:, 128:] + 1e-6)                    # torchaudio log_mels
        small = pm[:, :128] + jnp.dot(logmel.astype(cd), dct_ref[...],
                                      preferred_element_type=jnp.float32)
        if write_spec:
            out_refs[0][...] = spec
            out_refs[1][...] = small
        else:
            out_refs[0][...] = small
    return kernel


def _vmem_limit_bytes():
    """Generation-aware scoped-VMEM budget (v5e/v6e 128 MiB phys, v7x 64 MiB/TC)."""
    try:
        phys = int(pltpu.get_tpu_info().vmem_capacity_bytes)
    except Exception:
        phys = 64 * 1024 * 1024
    return max(16 * 1024 * 1024, min(48 * 1024 * 1024, phys // 2))


def _choose_tile_frames(n_frames, n_rows, target=256):
    """Frames per tile: multiple of 8, and >=2 total grid steps for dual-TC parts."""
    f8 = _round_up(max(n_frames, 8), 8)
    tf = min(_round_up(target, 8), f8)
    if n_rows * _cdiv(n_frames, tf) < 2 and f8 >= 16:
        tf = _round_up(_cdiv(f8, 2), 8)
    return tf


def stft_features(xr, halo, wcs, melfused, dct, *, tf, write_spec):
    """xr: (BC, NB, hop) hop-blocked padded signal; halo: (BC, n_tiles, nbpf-1, hop)."""
    BC, NB, hop = xr.shape
    n_tiles, n_halo = halo.shape[1], halo.shape[2]
    F_pad = n_tiles * tf
    fp2 = wcs.shape[1]

    out_shape, out_specs = [], []
    if write_spec:
        out_shape.append(jax.ShapeDtypeStruct((BC, F_pad, fp2), jnp.float32))
        out_specs.append(pl.BlockSpec((None, tf, fp2), lambda r, i: (r, i, 0)))
    out_shape.append(jax.ShapeDtypeStruct((BC, F_pad, 128), jnp.float32))
    out_specs.append(pl.BlockSpec((None, tf, 128), lambda r, i: (r, i, 0)))

    flops = 2 * BC * F_pad * (wcs.shape[0] * wcs.shape[1]
                              + melfused.shape[0] * melfused.shape[1]
                              + dct.shape[0] * dct.shape[1])
    bytes_in = xr.dtype.itemsize * (int(xr.size) + int(halo.size)) + \
        wcs.dtype.itemsize * (int(wcs.size) + int(melfused.size) + int(dct.size))
    bytes_out = 4 * BC * F_pad * (128 + (fp2 if write_spec else 0))
    cost = pl.CostEstimate(flops=int(flops),
                           transcendentals=int(BC * F_pad * 128),
                           bytes_accessed=int(bytes_in + bytes_out))

    grid_spec = pltpu.PrefetchScalarGridSpec(
        num_scalar_prefetch=0,
        grid=(BC, n_tiles),
        in_specs=[
            pl.BlockSpec((None, tf, hop), lambda r, i: (r, i, 0)),
            pl.BlockSpec((None, None, n_halo, hop), lambda r, i: (r, i, 0, 0)),
            # Constant weights: block index never changes -> DMA'd once and kept
            # resident.  (~1 MiB more VMEM could be saved with pl.Buffered(1);
            # skipped since per-step VMEM is already only ~5 MiB.)
            pl.BlockSpec(tuple(wcs.shape), lambda r, i: (0, 0)),
            pl.BlockSpec(tuple(melfused.shape), lambda r, i: (0, 0)),
            pl.BlockSpec(tuple(dct.shape), lambda r, i: (0, 0)),
        ],
        out_specs=tuple(out_specs),
    )
    return pl.pallas_call(
        _make_kernel(write_spec),
        out_shape=tuple(out_shape),
        grid_spec=grid_spec,
        cost_estimate=cost,
        compiler_params=pltpu.CompilerParams(
            dimension_semantics=("parallel", "parallel"),
            vmem_limit_bytes=_vmem_limit_bytes(),
        ),
    )(xr, halo, wcs, melfused, dct)


# -----------------------------------------------------------------------------
# JAX glue: hop-block framing prep, phase, deltas, CMVN, feature selection
# -----------------------------------------------------------------------------
def frame_blocks(wavs, n_fft, hop, nbpf, tf, n_tiles):
    """Reflect-pad (torch.stft center/reflect) and reshape the signal into
    NON-overlapping hop-sample blocks plus each tile's (nbpf-1)-block halo."""
    B, C, T = wavs.shape
    x = wavs.reshape(B * C, T)
    pad = n_fft // 2
    xp = jnp.pad(x, ((0, 0), (pad, pad)), mode="reflect")
    NB = _round_up(n_tiles * tf + nbpf - 1, 8)                  # hop blocks incl. halo
    total = NB * hop
    if xp.shape[1] < total:
        xp = jnp.pad(xp, ((0, 0), (0, total - xp.shape[1])))    # zero tail (never used
    else:                                                       #  by real frames)
        xp = xp[:, :total]
    xr = xp.reshape(B * C, NB, hop)
    halo_idx = (jnp.arange(n_tiles)[:, None] + 1) * tf + jnp.arange(nbpf - 1)[None, :]
    halo = xr[:, halo_idx, :]                                   # (BC, n_tiles, nbpf-1, hop)
    return xr, halo


def compute_deltas(x, win_length=5):
    # x: (..., time, feat); torchaudio.functional.compute_deltas (mode='replicate')
    n = (win_length - 1) // 2
    denom = n * (n + 1) * (2 * n + 1) / 3.0
    pad_cfg = [(0, 0)] * (x.ndim - 2) + [(n, n), (0, 0)]
    xp = jnp.pad(x, pad_cfg, mode="edge")
    T = x.shape[-2]
    out = jnp.zeros_like(x)
    for d in range(-n, n + 1):
        out = out + d * jax.lax.slice_in_dim(xp, d + n, d + n + T, axis=-2)
    return out / denom


def select_feat(variables, feat_type, channel=0, log=False, delta=0, cmvn=False,
                eps=1e-10):
    raw = variables[feat_type][:, channel]                      # (B, time, feat)
    if bool(log):
        raw = jnp.log(raw + eps)
    feats = [raw]
    for _ in range(int(delta)):
        feats.append(compute_deltas(feats[-1]))
    feats = jnp.concatenate(feats, axis=-1)
    if bool(cmvn):
        mean = feats.mean(axis=-2, keepdims=True)
        std = feats.std(axis=-2, keepdims=True, ddof=1)         # torch std is unbiased
        feats = (feats - mean) / (std + eps)
    return feats                                                # time-major


def online_preprocessor_forward(wavs, feat_list, *, sample_rate=16000, win_ms=25,
                                hop_ms=10, n_freq=201, n_mels=40, n_mfcc=13,
                                eps=1e-10, tile_frames=256, weight_dtype=jnp.float32):
    B, C, T = wavs.shape
    win = round(win_ms * sample_rate / 1000)
    hop = round(hop_ms * sample_rate / 1000)
    n_fft = (n_freq - 1) * 2
    assert win == n_fft, "default config has win_length == n_fft"

    need_spec = any(a["feat_type"] in ("complx", "linear", "phase") for a in feat_list)

    wcs, melfused, dct, n_freq_pad, nbpf = build_constants(
        sample_rate, n_fft, hop, n_freq, n_mels, n_mfcc)
    wcs = jnp.asarray(wcs, weight_dtype)
    melfused = jnp.asarray(melfused, weight_dtype)
    dct = jnp.asarray(dct, weight_dtype)

    F = 1 + T // hop
    tf = _choose_tile_frames(F, B * C, tile_frames)
    n_tiles = _cdiv(F, tf)
    xr, halo = frame_blocks(wavs, n_fft, hop, nbpf, tf, n_tiles)

    outs = stft_features(xr, halo, wcs, melfused, dct, tf=tf, write_spec=need_spec)

    # Keep the [:F] slice adjacent to the kernel so padded frames never reach users.
    small = outs[-1].reshape(B, C, n_tiles * tf, 128)[:, :, :F]
    variables = {"mel": small[..., :n_mels],
                 "mfcc": small[..., n_mels:n_mels + n_mfcc]}
    if need_spec:
        spec = outs[0].reshape(B, C, n_tiles * tf, 2 * n_freq_pad)[:, :, :F]
        real = spec[..., :n_freq]
        imag = spec[..., n_freq_pad:n_freq_pad + n_freq]
        variables["linear"] = real * real + imag * imag         # power dropped from kernel
        # TODO(synk): Mosaic atan2 lowering is not guaranteed; phase stays in XLA.
        variables["phase"] = jnp.arctan2(imag, real)
        variables["complx"] = jnp.stack([real, imag], axis=-1).reshape(B, C, F, 2 * n_freq)
    return [select_feat(variables, eps=eps, **args) for args in feat_list]


# -----------------------------------------------------------------------------
if __name__ == "__main__":
    key = jax.random.PRNGKey(0)
    B, C, T = 2, 2, 16000                       # 1 s of 16 kHz audio, 2 channels
    wavs = 0.1 * jax.random.normal(key, (B, C, T), dtype=jnp.float32)

    feat_list = [
        {"feat_type": "linear", "channel": 0, "log": True},
        {"feat_type": "mel", "channel": 0, "log": True, "delta": 2, "cmvn": True},
        {"feat_type": "mfcc", "channel": 1, "delta": 2, "cmvn": True},
        {"feat_type": "phase", "channel": 1},
        {"feat_type": "complx", "channel": 0},
    ]
    feats = online_preprocessor_forward(wavs, feat_list)
    for f in feats:
        jax.block_until_ready(f)

    n_frames = 1 + T // 160
    assert feats[0].shape == (B, n_frames, 201)
    assert feats[1].shape == (B, n_frames, 40 * 3)
    assert feats[2].shape == (B, n_frames, 13 * 3)
    assert feats[3].shape == (B, n_frames, 201)
    assert feats[4].shape == (B, n_frames, 402)
    assert all(bool(jnp.all(jnp.isfinite(f))) for f in feats)

    # Numerical sanity vs an exact float64 NumPy STFT (guards the in-kernel framing).
    wav_np = np.asarray(wavs, np.float64).reshape(B * C, T)
    xp_ref = np.pad(wav_np, ((0, 0), (200, 200)), mode="reflect")
    idx = (np.arange(n_frames) * 160)[:, None] + np.arange(400)[None, :]
    fr = xp_ref[:, idx] * hann_window(400)[None, None, :]
    cos_m, sin_m = dft_matrices(400, 201)
    re, im = fr @ cos_m, fr @ sin_m
    lin_ref = (re * re + im * im).reshape(B, C, n_frames, 201)[:, 0]
    lin_kernel = np.exp(np.asarray(feats[0], np.float64)) - 1e-10      # undo the log
    rel = np.max(np.abs(lin_kernel - lin_ref) / (np.abs(lin_ref) + 1e-2))
    assert rel < 0.1, f"linear power spectrum mismatch: max rel err {rel}"

    # Exercise the bf16-weight (v5e-friendly) + spec-skipping path.
    feats_b16 = online_preprocessor_forward(
        wavs,
        [{"feat_type": "mel", "channel": 0, "log": True},
         {"feat_type": "mfcc", "channel": 1}],
        weight_dtype=jnp.bfloat16)
    for f in feats_b16:
        jax.block_until_ready(f)
    assert feats_b16[0].shape == (B, n_frames, 40)
    assert feats_b16[1].shape == (B, n_frames, 13)
    assert all(bool(jnp.all(jnp.isfinite(f))) for f in feats_b16)

    print("KERNEL_OK")
</pallas_src>

<mosaic_0001>
module attributes {stable_mosaic.version = 11 : i64} {
  func.func @kernel(%arg0: i32, %arg1: i32, %arg2: memref<1x104x160xf32, #tpu.memory_space<vmem>>, %arg3: memref<1x1x2x160xf32, #tpu.memory_space<vmem>>, %arg4: memref<480x512xf32, #tpu.memory_space<vmem>>, %arg5: memref<256x256xf32, #tpu.memory_space<vmem>>, %arg6: memref<128x128xf32, #tpu.memory_space<vmem>>, %arg7: memref<1x104x512xf32, #tpu.memory_space<vmem>>, %arg8: memref<1x104x128xf32, #tpu.memory_space<vmem>>) attributes {dimension_semantics = [#tpu.dimension_semantics<parallel>, #tpu.dimension_semantics<parallel>], iteration_bounds = array<i64: 4, 1>, scalar_prefetch = 0 : i64, scratch_operands = 0 : i64, tpu.core_type = #tpu.core_type<tc>, window_params = [{transform_indices = @transform_0, window_bounds = array<i64: 1, 104, 160>}, {transform_indices = @transform_1, window_bounds = array<i64: 1, 1, 2, 160>}, {pipeline_mode = #tpu.pipeline_mode<synchronous>, transform_indices = @transform_2, window_bounds = array<i64: 480, 512>}, {pipeline_mode = #tpu.pipeline_mode<synchronous>, transform_indices = @transform_3, window_bounds = array<i64: 256, 256>}, {pipeline_mode = #tpu.pipeline_mode<synchronous>, transform_indices = @transform_4, window_bounds = array<i64: 128, 128>}, {transform_indices = @transform_5, window_bounds = array<i64: 1, 104, 512>}, {transform_indices = @transform_6, window_bounds = array<i64: 1, 104, 128>}]} {
    %c0 = arith.constant 0 : index
    %c0_0 = arith.constant 0 : index
    %c0_1 = arith.constant 0 : index
    %0 = vector.load %arg2[%c0, %c0_0, %c0_1] : memref<1x104x160xf32, #tpu.memory_space<vmem>>, vector<1x104x160xf32>
    %1 = vector.shape_cast %0 : vector<1x104x160xf32> to vector<104x160xf32>
    %c0_2 = arith.constant 0 : index
    %c0_3 = arith.constant 0 : index
    %c0_4 = arith.constant 0 : index
    %c0_5 = arith.constant 0 : index
    %2 = vector.load %arg3[%c0_2, %c0_3, %c0_4, %c0_5] : memref<1x1x2x160xf32, #tpu.memory_space<vmem>>, vector<1x1x2x160xf32>
    %3 = vector.shape_cast %2 : vector<1x1x2x160xf32> to vector<2x160xf32>
    %4 = tpu.concatenate %1, %3 in 0 : vector<104x160xf32>, vector<2x160xf32> -> vector<106x160xf32>
    %c0_6 = arith.constant 0 : index
    %c0_7 = arith.constant 0 : index
    %5 = vector.load %arg4[%c0_6, %c0_7] : memref<480x512xf32, #tpu.memory_space<vmem>>, vector<480x512xf32>
    %cst = arith.constant 0.000000e+00 : f32
    %6 = vector.broadcast %cst : f32 to vector<104x512xf32>
    %7 = vector.extract_strided_slice %4 {offsets = [0, 0], sizes = [104, 160], strides = [1, 1]} : vector<106x160xf32> to vector<104x160xf32>
    %8 = vector.extract_strided_slice %5 {offsets = [0, 0], sizes = [160, 512], strides = [1, 1]} : vector<480x512xf32> to vector<160x512xf32>
    %cst_8 = arith.constant dense<0.000000e+00> : vector<104x512xf32>
    %9 = tpu.matmul %7, %8, %cst_8 {dimension_numbers = #tpu.dot_dimension_numbers<[1], [0], [0], [1], [0, 0, 1, 1], [], []>} : vector<104x160xf32>, vector<160x512xf32>, vector<104x512xf32> -> vector<104x512xf32>
    %10 = arith.addf %6, %9 : vector<104x512xf32>
    %11 = vector.extract_strided_slice %4 {offsets = [1, 0], sizes = [104, 160], strides = [1, 1]} : vector<106x160xf32> to vector<104x160xf32>
    %12 = vector.extract_strided_slice %5 {offsets = [160, 0], sizes = [160, 512], strides = [1, 1]} : vector<480x512xf32> to vector<160x512xf32>
    %cst_9 = arith.constant dense<0.000000e+00> : vector<104x512xf32>
    %13 = tpu.matmul %11, %12, %cst_9 {dimension_numbers = #tpu.dot_dimension_numbers<[1], [0], [0], [1], [0, 0, 1, 1], [], []>} : vector<104x160xf32>, vector<160x512xf32>, vector<104x512xf32> -> vector<104x512xf32>
    %14 = arith.addf %10, %13 : vector<104x512xf32>
    %15 = vector.extract_strided_slice %4 {offsets = [2, 0], sizes = [104, 160], strides = [1, 1]} : vector<106x160xf32> to vector<104x160xf32>
    %16 = vector.extract_strided_slice %5 {offsets = [320, 0], sizes = [160, 512], strides = [1, 1]} : vector<480x512xf32> to vector<160x512xf32>
    %cst_10 = arith.constant dense<0.000000e+00> : vector<104x512xf32>
    %17 = tpu.matmul %15, %16, %cst_10 {dimension_numbers = #tpu.dot_dimension_numbers<[1], [0], [0], [1], [0, 0, 1, 1], [], []>} : vector<104x160xf32>, vector<160x512xf32>, vector<104x512xf32> -> vector<104x512xf32>
    %18 = arith.addf %14, %17 : vector<104x512xf32>
    %19 = vector.extract_strided_slice %18 {offsets = [0, 0], sizes = [104, 256], strides = [1, 1]} : vector<104x512xf32> to vector<104x256xf32>
    %20 = vector.extract_strided_slice %18 {offsets = [0, 256], sizes = [104, 256], strides = [1, 1]} : vector<104x512xf32> to vector<104x256xf32>
    %21 = arith.mulf %19, %19 : vector<104x256xf32>
    %22 = arith.mulf %20, %20 : vector<104x256xf32>
    %23 = arith.addf %21, %22 : vector<104x256xf32>
    %c0_11 = arith.constant 0 : index
    %c0_12 = arith.constant 0 : index
    %24 = vector.load %arg5[%c0_11, %c0_12] : memref<256x256xf32, #tpu.memory_space<vmem>>, vector<256x256xf32>
    %cst_13 = arith.constant dense<0.000000e+00> : vector<104x256xf32>
    %25 = tpu.matmul %23, %24, %cst_13 {dimension_numbers = #tpu.dot_dimension_numbers<[1], [0], [0], [1], [0, 0, 1, 1], [], []>} : vector<104x256xf32>, vector<256x256xf32>, vector<104x256xf32> -> vector<104x256xf32>
    %26 = vector.extract_strided_slice %25 {offsets = [0, 128], sizes = [104, 128], strides = [1, 1]} : vector<104x256xf32> to vector<104x128xf32>
    %cst_14 = arith.constant 9.99999997E-7 : f32
    %27 = vector.broadcast %cst_14 : f32 to vector<104x128xf32>
    %28 = arith.addf %26, %27 : vector<104x128xf32>
    %29 = math.log %28 : vector<104x128xf32>
    %30 = vector.extract_strided_slice %25 {offsets = [0, 0], sizes = [104, 128], strides = [1, 1]} : vector<104x256xf32> to vector<104x128xf32>
    %c0_15 = arith.constant 0 : index
    %c0_16 = arith.constant 0 : index
    %31 = vector.load %arg6[%c0_15, %c0_16] : memref<128x128xf32, #tpu.memory_space<vmem>>, vector<128x128xf32>
    %cst_17 = arith.constant dense<0.000000e+00> : vector<104x128xf32>
    %32 = tpu.matmul %29, %31, %cst_17 {dimension_numbers = #tpu.dot_dimension_numbers<[1], [0], [0], [1], [0, 0, 1, 1], [], []>} : vector<104x128xf32>, vector<128x128xf32>, vector<104x128xf32> -> vector<104x128xf32>
    %33 = arith.addf %30, %32 : vector<104x128xf32>
    %c0_18 = arith.constant 0 : index
    %c0_19 = arith.constant 0 : index
    %c0_20 = arith.constant 0 : index
    %34 = vector.load %arg7[%c0_18, %c0_19, %c0_20] : memref<1x104x512xf32, #tpu.memory_space<vmem>>, vector<1x104x512xf32>
    %35 = vector.shape_cast %34 : vector<1x104x512xf32> to vector<104x512xf32>
    %36 = vector.shape_cast %18 : vector<104x512xf32> to vector<1x104x512xf32>
    tpu.vector_store %arg7[%c0_18, %c0_19, %c0_20], %36 {strides = array<i32>} : memref<1x104x512xf32, #tpu.memory_space<vmem>>, vector<1x104x512xf32>,
    %c0_21 = arith.constant 0 : index
    %c0_22 = arith.constant 0 : index
    %c0_23 = arith.constant 0 : index
    %37 = vector.load %arg8[%c0_21, %c0_22, %c0_23] : memref<1x104x128xf32, #tpu.memory_space<vmem>>, vector<1x104x128xf32>
    %38 = vector.shape_cast %37 : vector<1x104x128xf32> to vector<104x128xf32>
    %39 = vector.shape_cast %33 : vector<104x128xf32> to vector<1x104x128xf32>
    tpu.vector_store %arg8[%c0_21, %c0_22, %c0_23], %39 {strides = array<i32>} : memref<1x104x128xf32, #tpu.memory_space<vmem>>, vector<1x104x128xf32>,
    return
  }
  func.func @transform_0(%arg0: i32, %arg1: i32) -> (i32, i32, i32) {
    %c0_i32 = arith.constant 0 : i32
    %c0_i32_0 = arith.constant 0 : i32
    return %arg0, %arg1, %c0_i32 : i32, i32, i32
  }
  func.func @transform_1(%arg0: i32, %arg1: i32) -> (i32, i32, i32, i32) {
    %c0_i32 = arith.constant 0 : i32
    %c0_i32_0 = arith.constant 0 : i32
    %c0_i32_1 = arith.constant 0 : i32
    return %arg0, %arg1, %c0_i32, %c0_i32_0 : i32, i32, i32, i32
  }
  func.func @transform_2(%arg0: i32, %arg1: i32) -> (i32, i32) {
    %c0_i32 = arith.constant 0 : i32
    %c0_i32_0 = arith.constant 0 : i32
    %c0_i32_1 = arith.constant 0 : i32
    return %c0_i32, %c0_i32_0 : i32, i32
  }
  func.func @transform_3(%arg0: i32, %arg1: i32) -> (i32, i32) {
    %c0_i32 = arith.constant 0 : i32
    %c0_i32_0 = arith.constant 0 : i32
    %c0_i32_1 = arith.constant 0 : i32
    return %c0_i32, %c0_i32_0 : i32, i32
  }
  func.func @transform_4(%arg0: i32, %arg1: i32) -> (i32, i32) {
    %c0_i32 = arith.constant 0 : i32
    %c0_i32_0 = arith.constant 0 : i32
    %c0_i32_1 = arith.constant 0 : i32
    return %c0_i32, %c0_i32_0 : i32, i32
  }
  func.func @transform_5(%arg0: i32, %arg1: i32) -> (i32, i32, i32) {
    %c0_i32 = arith.constant 0 : i32
    %c0_i32_0 = arith.constant 0 : i32
    return %arg0, %arg1, %c0_i32 : i32, i32, i32
  }
  func.func @transform_6(%arg0: i32, %arg1: i32) -> (i32, i32, i32) {
    %c0_i32 = arith.constant 0 : i32
    %c0_i32_0 = arith.constant 0 : i32
    return %arg0, %arg1, %c0_i32 : i32, i32, i32
  }
}

</mosaic_0001>

<llo_original>
// kernel: tpu_custom_call.1
$region0: #{tpu_custom_call.1}
  #allocation0 [shape = 'u32[]', space=smem, size = 0x4, offset = 0x4, fixed_abs, tag = 'smem constant byte address 0x4 - core index']
  #allocation1 [shape = 'u32[144,128]{1,0:T(1,128)}', space=vmem, size = 0x12000, scoped, tag = 'internal scratch']
  %s0 = inlined_call_operand.vmem [shape: f32[4,112,160], index: 0, kind: input, shape index: {}]
  %s1 = inlined_call_operand.vmem [shape: f32[4,1,2,160], index: 1, kind: input, shape index: {}]
  %s2 = inlined_call_operand.hbm [shape: f32[480,512], index: 2, kind: input, shape index: {}]
  %s3 = inlined_call_operand.vmem [shape: f32[256,256], index: 3, kind: input, shape index: {}]
  %s4 = inlined_call_operand.vmem [shape: f32[128,128], index: 4, kind: input, shape index: {}]
  %s5 = inlined_call_operand.hbm [shape: f32[4,104,512], index: 5, kind: output, shape index: {0}]
  %s6 = inlined_call_operand.hbm [shape: f32[4,104,128], index: 6, kind: output, shape index: {1}]
  %7 = xla_tuple %s5, %s6
  %s8 = sld [smem:[#allocation0]]
  $region65: #{tpu_custom_call.1} parent=0
    _
  %s10 = ssub.s32 1, %s8
  %s11 = scalar_select 0, %s10, %s8
  $region1: #{tpu_custom_call.1} parent=0
    #allocation2 [shape = 'u8[983040]{0}', space=vmem, size = 0xf0000, scoped, tag = 'input window, operand 2, single buffered']
    #allocation3 [shape = 's32[2]{0}', space=sflag, size = 0x8, scoped, tag = 'scoped memory for tpu_custom_call.1']
    #allocation4 [shape = 's32[2]{0}', space=sflag, size = 0x8, scoped, tag = 'scoped memory for tpu_custom_call.1']
    #allocation5 [shape = 'u8[425984]{0}', space=vmem, size = 0x68000, scoped, tag = 'output window, operand 0']
    #allocation6 [shape = 'u8[106496]{0}', space=vmem, size = 0x1a000, scoped, tag = 'output window, operand 1']
    #allocation7 [shape = 's32[2]{0}', space=sflag, size = 0x8, scoped, tag = 'scoped memory for tpu_custom_call.1']
    %12 = vsyncpa [#allocation3], 0
    %13 = vsyncpa [#allocation4], 0
    %s14 = scalar_lea.sflag [#allocation4], 1
    %15 = vsyncpa %s14, 0
    %16 = vsyncpa [#allocation7], 0
    %s17 = scalar_lea.sflag [#allocation7], 1
    %18 = vsyncpa %s17, 0
    loop: start=0, step=1, limit=6
    $region2: #{tpu_custom_call.1} parent=1 // loop_pre_header
      _
    $region3: #{tpu_custom_call.1} parent=1 // loop_header
      %s20 = sphi 0, %s24
      %p21 = scmp.ge.s32.totalorder %s20, 6
      %s27 = sphi 0, %s39
      %s28 = sphi 0, %s35
      %s29 = sphi 0, %s27
      %s30 = sphi 0, %s28
      %s31 = sphi 0, %s29
      %s32 = sphi 0, %s30
      %s44 = sphi 0, %s46
      %s47 = sphi 0, %s44
      %s48 = sphi 0, %s47
      %s64 = sphi 0, %s48
      %s72 = sphi 0, %s74
      %s75 = sphi 0, %s72
      %s76 = sphi 0, %s75
      %s92 = sphi 0, %s76
      %s96 = sphi 0, %s96
      %s98 = sphi 0, %s96
      %s99 = sphi 0, %s98
      %s113 = sphi 0, %s99
      %s117 = sphi 0, %s117
      %s119 = sphi 0, %s117
      %s120 = sphi 0, %s119
      %s134 = sphi 0, %s120
      %s138 = sphi 0, %s138
      %s140 = sphi 0, %s138
      %s141 = sphi 0, %s140
      %s155 = sphi 0, %s141
      %s163 = sphi 0, %s165
      %s166 = sphi 0, %s163
      %s167 = sphi 0, %s166
      %s183 = sphi 0, %s167
      %s191 = sphi 0, %s193
      %s194 = sphi 0, %s191
      %s195 = sphi 0, %s194
      %s211 = sphi 0, %s195
    $region4: #{tpu_custom_call.1} parent=1 // loop_header_branch
      %23 = sbr.rel (%p21) target = $region8
    $region5: #{tpu_custom_call.1} parent=1 // loop_body
      %s25 = ssub.s32 %s20, 1
      %s26 = ssub.s32 %s20, 2
      %s33 = sadd.s32 1, %s28
      %p34 = scmp.ge.s32.totalorder %s33, 1
      %s35 = scalar_select %p34, 0, %s33
      %s36 = sadd.s32 1, %s27
      %s37 = scalar_select %p34, %s36, %s27
      %p38 = scmp.ge.s32.totalorder %s37, 4
      %s39 = scalar_select %p38, 0, %s37
      %s40 = ssub.s32 %s27, %s39
      %s41 = ssub.s32 %s28, %s35
      %s42 = sor.u32 %s40, %s41
      %p43 = scmp.eq.s32.totalorder %s42, 0
      %s45 = sadd.s32 %s44, 1
      %s46 = scalar_select %p43, %s44, %s45
      %p49 = pneg %p43
      %p50 = scmp.eq.s32.totalorder %s20, 3
      %p51 = por %p49, %p50
      %p52 = scmp.ne.s32.totalorder %s44, %s47
      %p53 = scmp.eq.s32.totalorder %s20, 0
      %p54 = por %p52, %p53
      %p55 = scmp.ne.s32.totalorder %s44, %s47
      %p56 = scmp.eq.s32.totalorder %s25, 3
      %p57 = por %p55, %p56
      %p58 = scmp.ne.s32.totalorder %s47, %s48
      %p59 = scmp.eq.s32.totalorder %s25, 0
      %p60 = por %p58, %p59
      %p61 = scmp.ne.s32.totalorder %s47, %s48
      %p62 = scmp.eq.s32.totalorder %s26, 3
      %p63 = por %p61, %p62
      %p65 = scmp.ne.s32.totalorder %s48, %s64
      %p66 = scmp.eq.s32.totalorder %s26, 0
      %p67 = por %p65, %p66
      %s68 = ssub.s32 %s27, %s39
      %s69 = ssub.s32 %s28, %s35
      %s70 = sor.u32 %s68, %s69
      %p71 = scmp.eq.s32.totalorder %s70, 0
      %s73 = sadd.s32 %s72, 1
      %s74 = scalar_select %p71, %s72, %s73
      %p77 = pneg %p71
      %p78 = scmp.eq.s32.totalorder %s20, 3
      %p79 = por %p77, %p78
      %p80 = scmp.ne.s32.totalorder %s72, %s75
      %p81 = scmp.eq.s32.totalorder %s20, 0
      %p82 = por %p80, %p81
      %p83 = scmp.ne.s32.totalorder %s72, %s75
      %p84 = scmp.eq.s32.totalorder %s25, 3
      %p85 = por %p83, %p84
      %p86 = scmp.ne.s32.totalorder %s75, %s76
      %p87 = scmp.eq.s32.totalorder %s25, 0
      %p88 = por %p86, %p87
      %p89 = scmp.ne.s32.totalorder %s75, %s76
      %p90 = scmp.eq.s32.totalorder %s26, 3
      %p91 = por %p89, %p90
      %p93 = scmp.ne.s32.totalorder %s76, %s92
      %p94 = scmp.eq.s32.totalorder %s26, 0
      %p95 = por %p93, %p94
      %s97 = sadd.s32 %s96, 1
      %p100 = scmp.eq.s32.totalorder %s20, 3
      %p101 = scmp.ne.s32.totalorder %s96, %s98
      %p102 = scmp.eq.s32.totalorder %s20, 0
      %p103 = por %p101, %p102
      %p104 = scmp.ne.s32.totalorder %s96, %s98
      %p105 = scmp.eq.s32.totalorder %s25, 3
      %p106 = por %p104, %p105
      %p107 = scmp.ne.s32.totalorder %s98, %s99
      %p108 = scmp.eq.s32.totalorder %s25, 0
      %p109 = por %p107, %p108
      %p110 = scmp.ne.s32.totalorder %s98, %s99
      %p111 = scmp.eq.s32.totalorder %s26, 3
      %p112 = por %p110, %p111
      %p114 = scmp.ne.s32.totalorder %s99, %s113
      %p115 = scmp.eq.s32.totalorder %s26, 0
      %p116 = por %p114, %p115
      %s118 = sadd.s32 %s117, 1
      %p121 = scmp.eq.s32.totalorder %s20, 3
      %p122 = scmp.ne.s32.totalorder %s117, %s119
      %p123 = scmp.eq.s32.totalorder %s20, 0
      %p124 = por %p122, %p123
      %p125 = scmp.ne.s32.totalorder %s117, %s119
      %p126 = scmp.eq.s32.totalorder %s25, 3
      %p127 = por %p125, %p126
      %p128 = scmp.ne.s32.totalorder %s119, %s120
      %p129 = scmp.eq.s32.totalorder %s25, 0
      %p130 = por %p128, %p129
      %p131 = scmp.ne.s32.totalorder %s119, %s120
      %p132 = scmp.eq.s32.totalorder %s26, 3
      %p133 = por %p131, %p132
      %p135 = scmp.ne.s32.totalorder %s120, %s134
      %p136 = scmp.eq.s32.totalorder %s26, 0
      %p137 = por %p135, %p136
      %s139 = sadd.s32 %s138, 1
      %p142 = scmp.eq.s32.totalorder %s20, 3
      %p143 = scmp.ne.s32.totalorder %s138, %s140
      %p144 = scmp.eq.s32.totalorder %s20, 0
      %p145 = por %p143, %p144
      %p146 = scmp.ne.s32.totalorder %s138, %s140
      %p147 = scmp.eq.s32.totalorder %s25, 3
      %p148 = por %p146, %p147
      %p149 = scmp.ne.s32.totalorder %s140, %s141
      %p150 = scmp.eq.s32.totalorder %s25, 0
      %p151 = por %p149, %p150
      %p152 = scmp.ne.s32.totalorder %s140, %s141
      %p153 = scmp.eq.s32.totalorder %s26, 3
      %p154 = por %p152, %p153
      %p156 = scmp.ne.s32.totalorder %s141, %s155
      %p157 = scmp.eq.s32.totalorder %s26, 0
      %p158 = por %p156, %p157
      %s159 = ssub.s32 %s27, %s39
      %s160 = ssub.s32 %s28, %s35
      %s161 = sor.u32 %s159, %s160
      %p162 = scmp.eq.s32.totalorder %s161, 0
      %s164 = sadd.s32 %s163, 1
      %s165 = scalar_select %p162, %s163, %s164
      %p168 = pneg %p162
      %p169 = scmp.eq.s32.totalorder %s20, 3
      %p170 = por %p168, %p169
      %p171 = scmp.ne.s32.totalorder %s163, %s166
      %p172 = scmp.eq.s32.totalorder %s20, 0
      %p173 = por %p171, %p172
      %p174 = scmp.ne.s32.totalorder %s163, %s166
      %p175 = scmp.eq.s32.totalorder %s25, 3
      %p176 = por %p174, %p175
      %p177 = scmp.ne.s32.totalorder %s166, %s167
      %p178 = scmp.eq.s32.totalorder %s25, 0
      %p179 = por %p177, %p178
      %p180 = scmp.ne.s32.totalorder %s166, %s167
      %p181 = scmp.eq.s32.totalorder %s26, 3
      %p182 = por %p180, %p181
      %p184 = scmp.ne.s32.totalorder %s167, %s183
      %p185 = scmp.eq.s32.totalorder %s26, 0
      %p186 = por %p184, %p185
      %s187 = ssub.s32 %s27, %s39
      %s188 = ssub.s32 %s28, %s35
      %s189 = sor.u32 %s187, %s188
      %p190 = scmp.eq.s32.totalorder %s189, 0
      %s192 = sadd.s32 %s191, 1
      %s193 = scalar_select %p190, %s191, %s192
      %p196 = pneg %p190
      %p197 = scmp.eq.s32.totalorder %s20, 3
      %p198 = por %p196, %p197
      %p199 = scmp.ne.s32.totalorder %s191, %s194
      %p200 = scmp.eq.s32.totalorder %s20, 0
      %p201 = por %p199, %p200
      %p202 = scmp.ne.s32.totalorder %s191, %s194
      %p203 = scmp.eq.s32.totalorder %s25, 3
      %p204 = por %p202, %p203
      %p205 = scmp.ne.s32.totalorder %s194, %s195
      %p206 = scmp.eq.s32.totalorder %s25, 0
      %p207 = por %p205, %p206
      %p208 = scmp.ne.s32.totalorder %s194, %s195
      %p209 = scmp.eq.s32.totalorder %s26, 3
      %p210 = por %p208, %p209
      %p212 = scmp.ne.s32.totalorder %s195, %s211
      %p213 = scmp.eq.s32.totalorder %s26, 0
      %p214 = por %p212, %p213
      %p215 = scmp.le.s32.totalorder 1, %s20
      %p216 = scmp.lt.s32.totalorder %s20, 5
      %p217 = pnand %p215, %p216
      %p218 = pneg %p217
      // Predicated region
      $region9: #{tpu_custom_call.1} parent=5 // pred_check
        _
      $region10: #{tpu_custom_call.1} parent=5 // pred_check_branch
        %220 = sbr.rel (%p217) target = $region12
      $region11: #{tpu_custom_call.1} parent=5 // pred_region
        %s221 = ssub.s32 %s20, 1
        // Predicated region
        $region13: #{tpu_custom_call.1} parent=11 // pred_check
          %p222 = pneg %p109
        $region14: #{tpu_custom_call.1} parent=11 // pred_check_branch
          %224 = sbr.rel (%p222) target = $region16
        $region15: #{tpu_custom_call.1} parent=11 // pred_region
          %s226 = ssub.s32 30720, 30720
          %227 = vsyncadd [#allocation3], %s226
          %s228 = sshll.u32 [#allocation2], 4
          %s229 = int_to_ptr.vmem [resolvable:$true] %s228
          %234 = dma.hbm_to_vmem [thread:$0]  %s2, 30720, %s229, [#allocation3], 512, 512, 32
        $region16: #{tpu_custom_call.1} parent=11 // pred_fallthru
          _
        // Predicated region
        $region17: #{tpu_custom_call.1} parent=11 // pred_check
          %p235 = pneg %p130
        $region18: #{tpu_custom_call.1} parent=11 // pred_check_branch
          %237 = sbr.rel (%p235) target = $region20
        $region19: #{tpu_custom_call.1} parent=11 // pred_region
          _
        $region20: #{tpu_custom_call.1} parent=11 // pred_fallthru
          _
        // Predicated region
        $region21: #{tpu_custom_call.1} parent=11 // pred_check
          %p238 = pneg %p151
        $region22: #{tpu_custom_call.1} parent=11 // pred_check_branch
          %240 = sbr.rel (%p238) target = $region24
        $region23: #{tpu_custom_call.1} parent=11 // pred_region
          _
        $region24: #{tpu_custom_call.1} parent=11 // pred_fallthru
          _
      $region12: #{tpu_custom_call.1} parent=5 // pred_fallthru
        _
      %p241 = scmp.lt.s32.totalorder %s20, 4
      // Predicated region
      $region25: #{tpu_custom_call.1} parent=5 // pred_check
        %p242 = pneg %p241
      $region26: #{tpu_custom_call.1} parent=5 // pred_check_branch
        %244 = sbr.rel (%p242) target = $region28
      $region27: #{tpu_custom_call.1} parent=5 // pred_region
        // Predicated region
        $region29: #{tpu_custom_call.1} parent=27 // pred_check
          %p245 = pneg %p54
        $region30: #{tpu_custom_call.1} parent=27 // pred_check_branch
          %247 = sbr.rel (%p245) target = $region32
        $region31: #{tpu_custom_call.1} parent=27 // pred_region
          %s248 = smul.u32 13, %s28
          %s249 = ssub.s32 14, %s248
          %p250 = scmp.lt.s32.totalorder %s249, 13
          %s251 = scalar_select %p250, %s249, 13
          %s252 = smul.u32 128, %s251
          %s253 = smul.u32 %s252, 2
          %p254 = scmp.lt.s32.totalorder %s27, 3
          %s255 = scalar_select %p254, %s27, 3
          %p256 = scmp.lt.s32.totalorder %s248, 13
          %s257 = scalar_select %p256, %s248, 13
          %s258 = smul.addr %s257, 2
          %s259 = smul.addr %s255, 28
          %s260 = sadd.s32 %s258, %s259
          %s261 = smul.addr %s260, 8
          %s262 = scalar_lea.vmem %s0, %s261
          %s263 = smul.u32 13, %s28
          %s264 = ssub.s32 14, %s263
          %p265 = scmp.lt.s32.totalorder %s264, 13
          %s266 = scalar_select %p265, %s264, 13
          %s267 = smul.u32 128, %s266
          %s268 = smul.u32 %s267, 2
        $region32: #{tpu_custom_call.1} parent=27 // pred_fallthru
          _
        // Predicated region
        $region33: #{tpu_custom_call.1} parent=27 // pred_check
          %p269 = pneg %p82
        $region34: #{tpu_custom_call.1} parent=27 // pred_check_branch
          %271 = sbr.rel (%p269) target = $region36
        $region35: #{tpu_custom_call.1} parent=27 // pred_region
          %p272 = scmp.lt.s32.totalorder %s27, 3
          %s273 = scalar_select %p272, %s27, 3
          %p274 = scmp.lt.s32.totalorder %s28, 0
          %s275 = scalar_select %p274, %s28, 0
          %s276 = smul.addr %s275, 2
          %s277 = smul.addr %s273, 2
          %s278 = sadd.s32 %s276, %s277
          %s279 = smul.addr %s278, 2
          %s280 = scalar_lea.vmem %s1, %s279
        $region36: #{tpu_custom_call.1} parent=27 // pred_fallthru
          _
      $region28: #{tpu_custom_call.1} parent=5 // pred_fallthru
        _
      %p281 = scmp.le.s32.totalorder 1, %s20
      %p282 = scmp.lt.s32.totalorder %s20, 5
      %p283 = pnand %p281, %p282
      %p284 = pneg %p283
      // Predicated region
      $region37: #{tpu_custom_call.1} parent=5 // pred_check
        _
      $region38: #{tpu_custom_call.1} parent=5 // pred_check_branch
        %286 = sbr.rel (%p283) target = $region40
      $region39: #{tpu_custom_call.1} parent=5 // pred_region
        %s287 = ssub.s32 %s20, 1
        // Predicated region
        $region41: #{tpu_custom_call.1} parent=39 // pred_check
          %p288 = pneg %p109
        $region42: #{tpu_custom_call.1} parent=39 // pred_check_branch
          %290 = sbr.rel (%p288) target = $region44
        $region43: #{tpu_custom_call.1} parent=39 // pred_region
          %291 = dma.done [#allocation3], 30720
        $region44: #{tpu_custom_call.1} parent=39 // pred_fallthru
          _
        %s292 = smul.u32 13, %s30
        %s293 = ssub.s32 14, %s292
        %p294 = scmp.lt.s32.totalorder %s293, 13
        %s295 = scalar_select %p294, %s293, 13
        %s296 = smul.u32 128, %s295
        %s297 = smul.u32 %s296, 2
        %p298 = scmp.lt.s32.totalorder %s29, 3
        %s299 = scalar_select %p298, %s29, 3
        %p300 = scmp.lt.s32.totalorder %s292, 13
        %s301 = scalar_select %p300, %s292, 13
        %s302 = smul.addr %s301, 2
        %s303 = smul.addr %s299, 28
        %s304 = sadd.s32 %s302, %s303
        %s305 = smul.addr %s304, 8
        %s306 = scalar_lea.vmem %s0, %s305
        %p307 = pneg %p60
        %p308 = pneg %p57
        %p309 = scmp.lt.s32.totalorder %s29, 3
        %s310 = scalar_select %p309, %s29, 3
        %p311 = scmp.lt.s32.totalorder %s30, 0
        %s312 = scalar_select %p311, %s30, 0
        %s313 = smul.addr %s312, 2
        %s314 = smul.addr %s310, 2
        %s315 = sadd.s32 %s313, %s314
        %s316 = smul.addr %s315, 2
        %s317 = scalar_lea.vmem %s1, %s316
        %p318 = pneg %p88
        %p319 = pneg %p85
        %p320 = pneg %p109
        %p321 = pneg %p106
        %p322 = pneg %p130
        %p323 = pneg %p127
        %p324 = pneg %p151
        %p325 = pneg %p148
        %p326 = pneg %p179
        %p327 = pneg %p176
        %s328 = sand.u32 %s166, 1
        %s329 = scalar_lea.sflag [#allocation4], %s328
        %s330 = sand.u32 %s166, 1
        %s331 = smul.addr %s330, 416
        %s332 = scalar_lea.vmem [#allocation5], %s331
        %p333 = pneg %p207
        %p334 = pneg %p204
        %s335 = sand.u32 %s194, 1
        %s336 = scalar_lea.sflag [#allocation7], %s335
        %s337 = sand.u32 %s194, 1
        %s338 = smul.addr %s337, 104
        %s339 = scalar_lea.vmem [#allocation6], %s338
        %s340 = smul.u32 13, %s30
        %s341 = ssub.s32 14, %s340
        %p342 = scmp.lt.s32.totalorder %s341, 13
        %s343 = scalar_select %p342, %s341, 13
        %s344 = smul.u32 128, %s343
        %s345 = smul.u32 %s344, 2
        %p346 = scmp.lt.s32.totalorder %s29, 3
        %s347 = scalar_select %p346, %s29, 3
        %p348 = scmp.lt.s32.totalorder %s340, 13
        %s349 = scalar_select %p348, %s340, 13
        %s350 = smul.addr %s349, 2
        %s351 = smul.addr %s347, 28
        %s352 = sadd.s32 %s350, %s351
        %s353 = smul.addr %s352, 8
        %s354 = scalar_lea.vmem %s0, %s353
        %s355 = smul.u32 13, %s30
        %s356 = ssub.s32 14, %s355
        %p357 = scmp.lt.s32.totalorder %s356, 13
        %s358 = scalar_select %p357, %s356, 13
        %s359 = smul.u32 128, %s358
        %s360 = smul.u32 %s359, 2
        %p361 = scmp.lt.s32.totalorder %s29, 3
        %s362 = scalar_select %p361, %s29, 3
        %p363 = scmp.lt.s32.totalorder %s30, 0
        %s364 = scalar_select %p363, %s30, 0
        %s365 = smul.addr %s364, 2
        %s366 = smul.addr %s362, 2
        %s367 = sadd.s32 %s365, %s366
        %s368 = smul.addr %s367, 2
        %s369 = scalar_lea.vmem %s1, %s368
        %s370 = smul.u32 13, %s30
        %s371 = smul.u32 13, %s30
        %v372 = vld [vmem:[%s354] sm:$0xff]
        %v373 = vld [vmem:[%s354 + $0x8] sm:$0xff]
        %v374 = vld [vmem:[%s354 + $0x10] sm:$0xff]
        %v375 = vld [vmem:[%s354 + $0x18] sm:$0xff]
        %v376 = vld [vmem:[%s354 + $0x20] sm:$0xff]
        %v377 = vld [vmem:[%s354 + $0x28] sm:$0xff]
        %v378 = vld [vmem:[%s354 + $0x30] sm:$0xff]
        %v379 = vld [vmem:[%s354 + $0x38] sm:$0xff]
        %v380 = vld [vmem:[%s354 + $0x40] sm:$0xff]
        %v381 = vld [vmem:[%s354 + $0x48] sm:$0xff]
        %v382 = vld [vmem:[%s354 + $0x50] sm:$0xff]
        %v383 = vld [vmem:[%s354 + $0x58] sm:$0xff]
        %v384 = vld [vmem:[%s354 + $0x60] sm:$0xff]
        %v385 = vld [vmem:[%s354 + $0x68] sm:$0xff]
        %v386 = vld [vmem:[%s354 + $0x70] sm:$0xff]
        %v387 = vld [vmem:[%s354 + $0x78] sm:$0xff]
        %v388 = vld [vmem:[%s354 + $0x80] sm:$0xff]
        %v389 = vld [vmem:[%s354 + $0x88] sm:$0xff]
        %v390 = vld [vmem:[%s354 + $0x90] sm:$0xff]
        %v391 = vld [vmem:[%s354 + $0x98] sm:$0xff]
        %v392 = vld [vmem:[%s354 + $0xa0] sm:$0xff]
        %v393 = vld [vmem:[%s354 + $0xa8] sm:$0xff]
        %v394 = vld [vmem:[%s354 + $0xb0] sm:$0xff]
        %v395 = vld [vmem:[%s354 + $0xb8] sm:$0xff]
        %v396 = vld [vmem:[%s354 + $0xc0] sm:$0xff]
        %v397 = vld [vmem:[%s354 + $0xc8] sm:$0xff]
        %v398 = vld [vmem:[%s369] sm:$0xf]
        %v401 = vunpack.c.l.s4 1983009808
        %v402 = vunpack.c.0.s8 %v401
        %v403 = vlaneseq
        %v404 = vshrl.u32 %v403, 7
        %v405 = vsub.s32 %v402, %v404
        %v406 = vrot.slane %v398, %v405
        %v407 = vcombine.high %v406, %v406
        %v408 = vld [vmem:[#allocation2] sm:$0xff]
        %v409 = vld [vmem:[#allocation2 + $0x8] sm:$0xff]
        %v410 = vld [vmem:[#allocation2 + $0x10] sm:$0xff]
        %v411 = vld [vmem:[#allocation2 + $0x18] sm:$0xff]
        %v412 = vld [vmem:[#allocation2 + $0x20] sm:$0xff]
        %v413 = vld [vmem:[#allocation2 + $0x28] sm:$0xff]
        %v414 = vld [vmem:[#allocation2 + $0x30] sm:$0xff]
        %v415 = vld [vmem:[#allocation2 + $0x38] sm:$0xff]
        %v416 = vld [vmem:[#allocation2 + $0x40] sm:$0xff]
        %v417 = vld [vmem:[#allocation2 + $0x48] sm:$0xff]
        %v418 = vld [vmem:[#allocation2 + $0x50] sm:$0xff]
        %v419 = vld [vmem:[#allocation2 + $0x58] sm:$0xff]
        %v420 = vld [vmem:[#allocation2 + $0x60] sm:$0xff]
        %v421 = vld [vmem:[#allocation2 + $0x68] sm:$0xff]
        %v422 = vld [vmem:[#allocation2 + $0x70] sm:$0xff]
        %v423 = vld [vmem:[#allocation2 + $0x78] sm:$0xff]
        %v424 = vld [vmem:[#allocation2 + $0x80] sm:$0xff]
        %v425 = vld [vmem:[#allocation2 + $0x88] sm:$0xff]
        %v426 = vld [vmem:[#allocation2 + $0x90] sm:$0xff]
        %v427 = vld [vmem:[#allocation2 + $0x98] sm:$0xff]
        %v428 = vld [vmem:[#allocation2 + $0xa0] sm:$0xff]
        %v429 = vld [vmem:[#allocation2 + $0xa8] sm:$0xff]
        %v430 = vld [vmem:[#allocation2 + $0xb0] sm:$0xff]
        %v431 = vld [vmem:[#allocation2 + $0xb8] sm:$0xff]
        %v432 = vld [vmem:[#allocation2 + $0xc0] sm:$0xff]
        %v433 = vld [vmem:[#allocation2 + $0xc8] sm:$0xff]
        %v434 = vld [vmem:[#allocation2 + $0xd0] sm:$0xff]
        %v435 = vld [vmem:[#allocation2 + $0xd8] sm:$0xff]
        %v436 = vld [vmem:[#allocation2 + $0xe0] sm:$0xff]
        %v437 = vld [vmem:[#allocation2 + $0xe8] sm:$0xff]
        %v438 = vld [vmem:[#allocation2 + $0xf0] sm:$0xff]
        %v439 = vld [vmem:[#allocation2 + $0xf8] sm:$0xff]
        %v440 = vld [vmem:[#allocation2 + $0x100] sm:$0xff]
        %v441 = vld [vmem:[#allocation2 + $0x108] sm:$0xff]
        %v442 = vld [vmem:[#allocation2 + $0x110] sm:$0xff]
        %v443 = vld [vmem:[#allocation2 + $0x118] sm:$0xff]
        %v444 = vld [vmem:[#allocation2 + $0x120] sm:$0xff]
        %v445 = vld [vmem:[#allocation2 + $0x128] sm:$0xff]
        %v446 = vld [vmem:[#allocation2 + $0x130] sm:$0xff]
        %v447 = vld [vmem:[#allocation2 + $0x138] sm:$0xff]
        %v448 = vld [vmem:[#allocation2 + $0x140] sm:$0xff]
        %v449 = vld [vmem:[#allocation2 + $0x148] sm:$0xff]
        %v450 = vld [vmem:[#allocation2 + $0x150] sm:$0xff]
        %v451 = vld [vmem:[#allocation2 + $0x158] sm:$0xff]
        %v452 = vld [vmem:[#allocation2 + $0x160] sm:$0xff]
        %v453 = vld [vmem:[#allocation2 + $0x168] sm:$0xff]
        %v454 = vld [vmem:[#allocation2 + $0x170] sm:$0xff]
        %v455 = vld [vmem:[#allocation2 + $0x178] sm:$0xff]
        %v456 = vld [vmem:[#allocation2 + $0x180] sm:$0xff]
        %v457 = vld [vmem:[#allocation2 + $0x188] sm:$0xff]
        %v458 = vld [vmem:[#allocation2 + $0x190] sm:$0xff]
        %v459 = vld [vmem:[#allocation2 + $0x198] sm:$0xff]
        %v460 = vld [vmem:[#allocation2 + $0x1a0] sm:$0xff]
        %v461 = vld [vmem:[#allocation2 + $0x1a8] sm:$0xff]
        %v462 = vld [vmem:[#allocation2 + $0x1b0] sm:$0xff]
        %v463 = vld [vmem:[#allocation2 + $0x1b8] sm:$0xff]
        %v464 = vld [vmem:[#allocation2 + $0x1c0] sm:$0xff]
        %v465 = vld [vmem:[#allocation2 + $0x1c8] sm:$0xff]
        %v466 = vld [vmem:[#allocation2 + $0x1d0] sm:$0xff]
        %v467 = vld [vmem:[#allocation2 + $0x1d8] sm:$0xff]
        %v468 = vld [vmem:[#allocation2 + $0x1e0] sm:$0xff]
        %v469 = vld [vmem:[#allocation2 + $0x1e8] sm:$0xff]
        %v470 = vld [vmem:[#allocation2 + $0x1f0] sm:$0xff]
        %v471 = vld [vmem:[#allocation2 + $0x1f8] sm:$0xff]
        %v472 = vld [vmem:[#allocation2 + $0x200] sm:$0xff]
        %v473 = vld [vmem:[#allocation2 + $0x208] sm:$0xff]
        %v474 = vld [vmem:[#allocation2 + $0x210] sm:$0xff]
        %v475 = vld [vmem:[#allocation2 + $0x218] sm:$0xff]
        %v476 = vld [vmem:[#allocation2 + $0x220] sm:$0xff]
        %v477 = vld [vmem:[#allocation2 + $0x228] sm:$0xff]
        %v478 = vld [vmem:[#allocation2 + $0x230] sm:$0xff]
        %v479 = vld [vmem:[#allocation2 + $0x238] sm:$0xff]
        %v480 = vld [vmem:[#allocation2 + $0x240] sm:$0xff]
        %v481 = vld [vmem:[#allocation2 + $0x248] sm:$0xff]
        %v482 = vld [vmem:[#allocation2 + $0x250] sm:$0xff]
        %v483 = vld [vmem:[#allocation2 + $0x258] sm:$0xff]
        %v484 = vld [vmem:[#allocation2 + $0x260] sm:$0xff]
        %v485 = vld [vmem:[#allocation2 + $0x268] sm:$0xff]
        %v486 = vld [vmem:[#allocation2 + $0x270] sm:$0xff]
        %v487 = vld [vmem:[#allocation2 + $0x278] sm:$0xff]
        %v488 = vld [vmem:[#allocation2 + $0x280] sm:$0xff]
        %v489 = vld [vmem:[#allocation2 + $0x288] sm:$0xff]
        %v490 = vld [vmem:[#allocation2 + $0x290] sm:$0xff]
        %v491 = vld [vmem:[#allocation2 + $0x298] sm:$0xff]
        %v492 = vld [vmem:[#allocation2 + $0x2a0] sm:$0xff]
        %v493 = vld [vmem:[#allocation2 + $0x2a8] sm:$0xff]
        %v494 = vld [vmem:[#allocation2 + $0x2b0] sm:$0xff]
        %v495 = vld [vmem:[#allocation2 + $0x2b8] sm:$0xff]
        %v496 = vld [vmem:[#allocation2 + $0x2c0] sm:$0xff]
        %v497 = vld [vmem:[#allocation2 + $0x2c8] sm:$0xff]
        %v498 = vld [vmem:[#allocation2 + $0x2d0] sm:$0xff]
        %v499 = vld [vmem:[#allocation2 + $0x2d8] sm:$0xff]
        %v500 = vld [vmem:[#allocation2 + $0x2e0] sm:$0xff]
        %v501 = vld [vmem:[#allocation2 + $0x2e8] sm:$0xff]
        %v502 = vld [vmem:[#allocation2 + $0x2f0] sm:$0xff]
        %v503 = vld [vmem:[#allocation2 + $0x2f8] sm:$0xff]
        %v504 = vld [vmem:[#allocation2 + $0x300] sm:$0xff]
        %v505 = vld [vmem:[#allocation2 + $0x308] sm:$0xff]
        %v506 = vld [vmem:[#allocation2 + $0x310] sm:$0xff]
        %v507 = vld [vmem:[#allocation2 + $0x318] sm:$0xff]
        %v508 = vld [vmem:[#allocation2 + $0x320] sm:$0xff]
        %v509 = vld [vmem:[#allocation2 + $0x328] sm:$0xff]
        %v510 = vld [vmem:[#allocation2 + $0x330] sm:$0xff]
        %v511 = vld [vmem:[#allocation2 + $0x338] sm:$0xff]
        %v512 = vld [vmem:[#allocation2 + $0x340] sm:$0xff]
        %v513 = vld [vmem:[#allocation2 + $0x348] sm:$0xff]
        %v514 = vld [vmem:[#allocation2 + $0x350] sm:$0xff]
        %v515 = vld [vmem:[#allocation2 + $0x358] sm:$0xff]
        %v516 = vld [vmem:[#allocation2 + $0x360] sm:$0xff]
        %v517 = vld [vmem:[#allocation2 + $0x368] sm:$0xff]
        %v518 = vld [vmem:[#allocation2 + $0x370] sm:$0xff]
        %v519 = vld [vmem:[#allocation2 + $0x378] sm:$0xff]
        %v520 = vld [vmem:[#allocation2 + $0x380] sm:$0xff]
        %v521 = vld [vmem:[#allocation2 + $0x388] sm:$0xff]
        %v522 = vld [vmem:[#allocation2 + $0x390] sm:$0xff]
        %v523 = vld [vmem:[#allocation2 + $0x398] sm:$0xff]
        %v524 = vld [vmem:[#allocation2 + $0x3a0] sm:$0xff]
        %v525 = vld [vmem:[#allocation2 + $0x3a8] sm:$0xff]
        %v526 = vld [vmem:[#allocation2 + $0x3b0] sm:$0xff]
        %v527 = vld [vmem:[#allocation2 + $0x3b8] sm:$0xff]
        %v528 = vld [vmem:[#allocation2 + $0x3c0] sm:$0xff]
        %v529 = vld [vmem:[#allocation2 + $0x3c8] sm:$0xff]
        %v530 = vld [vmem:[#allocation2 + $0x3d0] sm:$0xff]
        %v531 = vld [vmem:[#allocation2 + $0x3d8] sm:$0xff]
        %v532 = vld [vmem:[#allocation2 + $0x3e0] sm:$0xff]
        %v533 = vld [vmem:[#allocation2 + $0x3e8] sm:$0xff]
        %v534 = vld [vmem:[#allocation2 + $0x3f0] sm:$0xff]
        %v535 = vld [vmem:[#allocation2 + $0x3f8] sm:$0xff]
        %v536 = vld [vmem:[#allocation2 + $0x400] sm:$0xff]
        %v537 = vld [vmem:[#allocation2 + $0x408] sm:$0xff]
        %v538 = vld [vmem:[#allocation2 + $0x410] sm:$0xff]
        %v539 = vld [vmem:[#allocation2 + $0x418] sm:$0xff]
        %v540 = vld [vmem:[#allocation2 + $0x420] sm:$0xff]
        %v541 = vld [vmem:[#allocation2 + $0x428] sm:$0xff]
        %v542 = vld [vmem:[#allocation2 + $0x430] sm:$0xff]
        %v543 = vld [vmem:[#allocation2 + $0x438] sm:$0xff]
        %v544 = vld [vmem:[#allocation2 + $0x440] sm:$0xff]
        %v545 = vld [vmem:[#allocation2 + $0x448] sm:$0xff]
        %v546 = vld [vmem:[#allocation2 + $0x450] sm:$0xff]
        %v547 = vld [vmem:[#allocation2 + $0x458] sm:$0xff]
        %v548 = vld [vmem:[#allocation2 + $0x460] sm:$0xff]
        %v549 = vld [vmem:[#allocation2 + $0x468] sm:$0xff]
        %v550 = vld [vmem:[#allocation2 + $0x470] sm:$0xff]
        %v551 = vld [vmem:[#allocation2 + $0x478] sm:$0xff]
        %v552 = vld [vmem:[#allocation2 + $0x480] sm:$0xff]
        %v553 = vld [vmem:[#allocation2 + $0x488] sm:$0xff]
        %v554 = vld [vmem:[#allocation2 + $0x490] sm:$0xff]
        %v555 = vld [vmem:[#allocation2 + $0x498] sm:$0xff]
        %v556 = vld [vmem:[#allocation2 + $0x4a0] sm:$0xff]
        %v557 = vld [vmem:[#allocation2 + $0x4a8] sm:$0xff]
        %v558 = vld [vmem:[#allocation2 + $0x4b0] sm:$0xff]
        %v559 = vld [vmem:[#allocation2 + $0x4b8] sm:$0xff]
        %v560 = vld [vmem:[#allocation2 + $0x4c0] sm:$0xff]
        %v561 = vld [vmem:[#allocation2 + $0x4c8] sm:$0xff]
        %v562 = vld [vmem:[#allocation2 + $0x4d0] sm:$0xff]
        %v563 = vld [vmem:[#allocation2 + $0x4d8] sm:$0xff]
        %v564 = vld [vmem:[#allocation2 + $0x4e0] sm:$0xff]
        %v565 = vld [vmem:[#allocation2 + $0x4e8] sm:$0xff]
        %v566 = vld [vmem:[#allocation2 + $0x4f0] sm:$0xff]
        %v567 = vld [vmem:[#allocation2 + $0x4f8] sm:$0xff]
        %v568 = vld [vmem:[#allocation2 + $0x500] sm:$0xff]
        %v569 = vld [vmem:[#allocation2 + $0x508] sm:$0xff]
        %v570 = vld [vmem:[#allocation2 + $0x510] sm:$0xff]
        %v571 = vld [vmem:[#allocation2 + $0x518] sm:$0xff]
        %v572 = vld [vmem:[#allocation2 + $0x520] sm:$0xff]
        %v573 = vld [vmem:[#allocation2 + $0x528] sm:$0xff]
        %v574 = vld [vmem:[#allocation2 + $0x530] sm:$0xff]
        %v575 = vld [vmem:[#allocation2 + $0x538] sm:$0xff]
        %v576 = vld [vmem:[#allocation2 + $0x540] sm:$0xff]
        %v577 = vld [vmem:[#allocation2 + $0x548] sm:$0xff]
        %v578 = vld [vmem:[#allocation2 + $0x550] sm:$0xff]
        %v579 = vld [vmem:[#allocation2 + $0x558] sm:$0xff]
        %v580 = vld [vmem:[#allocation2 + $0x560] sm:$0xff]
        %v581 = vld [vmem:[#allocation2 + $0x568] sm:$0xff]
        %v582 = vld [vmem:[#allocation2 + $0x570] sm:$0xff]
        %v583 = vld [vmem:[#allocation2 + $0x578] sm:$0xff]
        %v584 = vld [vmem:[#allocation2 + $0x580] sm:$0xff]
        %v585 = vld [vmem:[#allocation2 + $0x588] sm:$0xff]
        %v586 = vld [vmem:[#allocation2 + $0x590] sm:$0xff]
        %v587 = vld [vmem:[#allocation2 + $0x598] sm:$0xff]
        %v588 = vld [vmem:[#allocation2 + $0x5a0] sm:$0xff]
        %v589 = vld [vmem:[#allocation2 + $0x5a8] sm:$0xff]
        %v590 = vld [vmem:[#allocation2 + $0x5b0] sm:$0xff]
        %v591 = vld [vmem:[#allocation2 + $0x5b8] sm:$0xff]
        %v592 = vld [vmem:[#allocation2 + $0x5c0] sm:$0xff]
        %v593 = vld [vmem:[#allocation2 + $0x5c8] sm:$0xff]
        %v594 = vld [vmem:[#allocation2 + $0x5d0] sm:$0xff]
        %v595 = vld [vmem:[#allocation2 + $0x5d8] sm:$0xff]
        %v596 = vld [vmem:[#allocation2 + $0x5e0] sm:$0xff]
        %v597 = vld [vmem:[#allocation2 + $0x5e8] sm:$0xff]
        %v598 = vld [vmem:[#allocation2 + $0x5f0] sm:$0xff]
        %v599 = vld [vmem:[#allocation2 + $0x5f8] sm:$0xff]
        %v600 = vld [vmem:[#allocation2 + $0x600] sm:$0xff]
        %v601 = vld [vmem:[#allocation2 + $0x608] sm:$0xff]
        %v602 = vld [vmem:[#allocation2 + $0x610] sm:$0xff]
        %v603 = vld [vmem:[#allocation2 + $0x618] sm:$0xff]
        %v604 = vld [vmem:[#allocation2 + $0x620] sm:$0xff]
        %v605 = vld [vmem:[#allocation2 + $0x628] sm:$0xff]
        %v606 = vld [vmem:[#allocation2 + $0x630] sm:$0xff]
        %v607 = vld [vmem:[#allocation2 + $0x638] sm:$0xff]
        %v608 = vld [vmem:[#allocation2 + $0x640] sm:$0xff]
        %v609 = vld [vmem:[#allocation2 + $0x648] sm:$0xff]
        %v610 = vld [vmem:[#allocation2 + $0x650] sm:$0xff]
        %v611 = vld [vmem:[#allocation2 + $0x658] sm:$0xff]
        %v612 = vld [vmem:[#allocation2 + $0x660] sm:$0xff]
        %v613 = vld [vmem:[#allocation2 + $0x668] sm:$0xff]
        %v614 = vld [vmem:[#allocation2 + $0x670] sm:$0xff]
        %v615 = vld [vmem:[#allocation2 + $0x678] sm:$0xff]
        %v616 = vld [vmem:[#allocation2 + $0x680] sm:$0xff]
        %v617 = vld [vmem:[#allocation2 + $0x688] sm:$0xff]
        %v618 = vld [vmem:[#allocation2 + $0x690] sm:$0xff]
        %v619 = vld [vmem:[#allocation2 + $0x698] sm:$0xff]
        %v620 = vld [vmem:[#allocation2 + $0x6a0] sm:$0xff]
        %v621 = vld [vmem:[#allocation2 + $0x6a8] sm:$0xff]
        %v622 = vld [vmem:[#allocation2 + $0x6b0] sm:$0xff]
        %v623 = vld [vmem:[#allocation2 + $0x6b8] sm:$0xff]
        %v624 = vld [vmem:[#allocation2 + $0x6c0] sm:$0xff]
        %v625 = vld [vmem:[#allocation2 + $0x6c8] sm:$0xff]
        %v626 = vld [vmem:[#allocation2 + $0x6d0] sm:$0xff]
        %v627 = vld [vmem:[#allocation2 + $0x6d8] sm:$0xff]
        %v628 = vld [vmem:[#allocation2 + $0x6e0] sm:$0xff]
        %v629 = vld [vmem:[#allocation2 + $0x6e8] sm:$0xff]
        %v630 = vld [vmem:[#allocation2 + $0x6f0] sm:$0xff]
        %v631 = vld [vmem:[#allocation2 + $0x6f8] sm:$0xff]
        %v632 = vld [vmem:[#allocation2 + $0x700] sm:$0xff]
        %v633 = vld [vmem:[#allocation2 + $0x708] sm:$0xff]
        %v634 = vld [vmem:[#allocation2 + $0x710] sm:$0xff]
        %v635 = vld [vmem:[#allocation2 + $0x718] sm:$0xff]
        %v636 = vld [vmem:[#allocation2 + $0x720] sm:$0xff]
        %v637 = vld [vmem:[#allocation2 + $0x728] sm:$0xff]
        %v638 = vld [vmem:[#allocation2 + $0x730] sm:$0xff]
        %v639 = vld [vmem:[#allocation2 + $0x738] sm:$0xff]
        %v640 = vld [vmem:[#allocation2 + $0x740] sm:$0xff]
        %v641 = vld [vmem:[#allocation2 + $0x748] sm:$0xff]
        %v642 = vld [vmem:[#allocation2 + $0x750] sm:$0xff]
        %v643 = vld [vmem:[#allocation2 + $0x758] sm:$0xff]
        %v644 = vld [vmem:[#allocation2 + $0x760] sm:$0xff]
        %v645 = vld [vmem:[#allocation2 + $0x768] sm:$0xff]
        %v646 = vld [vmem:[#allocation2 + $0x770] sm:$0xff]
        %v647 = vld [vmem:[#allocation2 + $0x778] sm:$0xff]
        %vm674 = vcmask 1046528
        %v675 = vrot.slane %v372, 1
        %v676 = vrot.slane %v374, 1
        %v677 = vsel %vm674, %v675, %v676
        %v678 = vrot.slane %v373, 1
        %v679 = vrot.slane %v375, 1
        %v680 = vsel %vm674, %v678, %v679
        %v681 = vrot.slane %v376, 1
        %v682 = vsel %vm674, %v676, %v681
        %v683 = vrot.slane %v377, 1
        %v684 = vsel %vm674, %v679, %v683
        %v685 = vrot.slane %v378, 1
        %v686 = vsel %vm674, %v681, %v685
        %v687 = vrot.slane %v379, 1
        %v688 = vsel %vm674, %v683, %v687
        %v689 = vrot.slane %v380, 1
        %v690 = vsel %vm674, %v685, %v689
        %v691 = vrot.slane %v381, 1
        %v692 = vsel %vm674, %v687, %v691
        %v693 = vrot.slane %v382, 1
        %v694 = vsel %vm674, %v689, %v693
        %v695 = vrot.slane %v383, 1
        %v696 = vsel %vm674, %v691, %v695
        %v697 = vrot.slane %v384, 1
        %v698 = vsel %vm674, %v693, %v697
        %v699 = vrot.slane %v385, 1
        %v700 = vsel %vm674, %v695, %v699
        %v701 = vrot.slane %v386, 1
        %v702 = vsel %vm674, %v697, %v701
        %v703 = vrot.slane %v387, 1
        %v704 = vsel %vm674, %v699, %v703
        %v705 = vrot.slane %v388, 1
        %v706 = vsel %vm674, %v701, %v705
        %v707 = vrot.slane %v389, 1
        %v708 = vsel %vm674, %v703, %v707
        %v709 = vrot.slane %v390, 1
        %v710 = vsel %vm674, %v705, %v709
        %v711 = vrot.slane %v391, 1
        %v712 = vsel %vm674, %v707, %v711
        %v713 = vrot.slane %v392, 1
        %v714 = vsel %vm674, %v709, %v713
        %v715 = vrot.slane %v393, 1
        %v716 = vsel %vm674, %v711, %v715
        %v717 = vrot.slane %v394, 1
        %v718 = vsel %vm674, %v713, %v717
        %v719 = vrot.slane %v395, 1
        %v720 = vsel %vm674, %v715, %v719
        %v721 = vrot.slane %v396, 1
        %v722 = vsel %vm674, %v717, %v721
        %v723 = vrot.slane %v397, 1
        %v724 = vsel %vm674, %v719, %v723
        %v725 = vrot.slane %v406, 1
        %v726 = vsel %vm674, %v721, %v725
        %v727 = vrot.slane %v407, 1
        %v728 = vsel %vm674, %v723, %v727
        %vm742 = vcmask 261120
        %v743 = vsel %vm742, %v680, 0
        %v745 = vsel %vm742, %v684, 0
        %v747 = vsel %vm742, %v688, 0
        %v749 = vsel %vm742, %v692, 0
        %v751 = vsel %vm742, %v696, 0
        %v753 = vsel %vm742, %v700, 0
        %v755 = vsel %vm742, %v704, 0
        %v757 = vsel %vm742, %v708, 0
        %v759 = vsel %vm742, %v712, 0
        %v761 = vsel %vm742, %v716, 0
        %v763 = vsel %vm742, %v720, 0
        %v765 = vsel %vm742, %v724, 0
        %v767 = vsel %vm742, %v728, 0
        %769 = vmatprep.subr.mxu0 %v549
        %770 = vmatpush1.msra.mxu0 %v548
        %771 = vmatprep.subr.mxu0 %v545
        %772 = vmatpush1.msra.mxu0 %v544
        %773 = vmatprep.subr.mxu0 %v541
        %774 = vmatpush1.msra.mxu0 %v540
        %775 = vmatprep.subr.mxu0 %v537
        %776 = vmatpush1.msra.mxu0 %v536
        %777 = vmatprep.subr.mxu0 %v533
        %778 = vmatpush1.msra.mxu0 %v532
        %779 = vmatprep.subr.mxu0 %v529
        %780 = vmatpush1.msra.mxu0 %v528
        %781 = vmatprep.subr.mxu0 %v525
        %782 = vmatpush1.msra.mxu0 %v524
        %783 = vmatprep.subr.mxu0 %v521
        %784 = vmatpush1.msra.mxu0 %v520
        %785 = vmatprep.subr.mxu0 %v517
        %786 = vmatpush1.msra.mxu0 %v516
        %787 = vmatprep.subr.mxu0 %v513
        %788 = vmatpush1.msra.mxu0 %v512
        %789 = vmatprep.subr.mxu0 %v509
        %790 = vmatpush1.msra.mxu0 %v508
        %791 = vmatprep.subr.mxu0 %v505
        %792 = vmatpush1.msra.mxu0 %v504
        %793 = vmatprep.subr.mxu0 %v501
        %794 = vmatpush1.msra.mxu0 %v500
        %795 = vmatprep.subr.mxu0 %v497
        %796 = vmatpush1.msra.mxu0 %v496
        %797 = vmatprep.subr.mxu0 %v493
        %798 = vmatpush1.msra.mxu0 %v492
        %799 = vmatprep.subr.mxu0 %v489
        %800 = vmatpush1.msra.mxu0 %v488
        %801 = vmatprep.subr.mxu0 0.0
        %802 = vmatpush2.msra.mxu0 0.0
        %803 = vmatprep.subr.mxu0 0.0
        %804 = vmatpush2.msra.mxu0 0.0
        %805 = vmatprep.subr.mxu0 0.0
        %806 = vmatpush2.msra.mxu0 0.0
        %807 = vmatprep.subr.mxu0 0.0
        %808 = vmatpush2.msra.mxu0 0.0
        %809 = vmatprep.subr.mxu0 0.0
        %810 = vmatpush2.msra.mxu0 0.0
        %811 = vmatprep.subr.mxu0 0.0
        %812 = vmatpush2.msra.mxu0 0.0
        %813 = vmatprep.subr.mxu0 0.0
        %814 = vmatpush2.msra.mxu0 0.0
        %815 = vmatprep.subr.mxu0 0.0
        %816 = vmatpush2.msra.mxu0 0.0
        %817 = vmatprep.subr.mxu0 0.0
        %818 = vmatpush2.msra.mxu0 0.0
        %819 = vmatprep.subr.mxu0 0.0
        %820 = vmatpush2.msra.mxu0 0.0
        %821 = vmatprep.subr.mxu0 0.0
        %822 = vmatpush2.msra.mxu0 0.0
        %823 = vmatprep.subr.mxu0 0.0
        %824 = vmatpush2.msra.mxu0 0.0
        %825 = vmatprep.subr.mxu0 %v565
        %826 = vmatpush2.msra.mxu0 %v564
        %827 = vmatprep.subr.mxu0 %v561
        %828 = vmatpush2.msra.mxu0 %v560
        %829 = vmatprep.subr.mxu0 %v557
        %830 = vmatpush2.msra.mxu0 %v556
        %831 = vmatprep.subr.mxu0 %v553
        %832 = vmatpush2.msra.mxu0 %v552
        %833 = vmatprep.mubr.f32.mxu0 %v743
        %834 = vmatmul.mubr.f32.gmra.mxu0 %v677
        %v835 = vpop.f32.mrf.mxu0
        %v836 = vadd.f32 0.0, %v835
        %v837 = vpop.f32.mrf.mxu0
        %v838 = vadd.f32 0.0, %v837
        %839 = vmatprep.mubr.f32.mxu0 %v745
        %840 = vmatmul.mubr.f32.gmra.mxu0 %v682
        %v841 = vpop.f32.mrf.mxu0
        %v842 = vadd.f32 0.0, %v841
        %v843 = vpop.f32.mrf.mxu0
        %v844 = vadd.f32 0.0, %v843
        %845 = vmatprep.mubr.f32.mxu0 %v747
        %846 = vmatmul.mubr.f32.gmra.mxu0 %v686
        %v847 = vpop.f32.mrf.mxu0
        %v848 = vadd.f32 0.0, %v847
        %v849 = vpop.f32.mrf.mxu0
        %v850 = vadd.f32 0.0, %v849
        %851 = vmatprep.mubr.f32.mxu0 %v749
        %852 = vmatmul.mubr.f32.gmra.mxu0 %v690
        %v853 = vpop.f32.mrf.mxu0
        %v854 = vadd.f32 0.0, %v853
        %v855 = vpop.f32.mrf.mxu0
        %v856 = vadd.f32 0.0, %v855
        %857 = vmatprep.mubr.f32.mxu0 %v751
        %858 = vmatmul.mubr.f32.gmra.mxu0 %v694
        %v859 = vpop.f32.mrf.mxu0
        %v860 = vadd.f32 0.0, %v859
        %v861 = vpop.f32.mrf.mxu0
        %v862 = vadd.f32 0.0, %v861
        %863 = vmatprep.mubr.f32.mxu0 %v753
        %864 = vmatmul.mubr.f32.gmra.mxu0 %v698
        %v865 = vpop.f32.mrf.mxu0
        %v866 = vadd.f32 0.0, %v865
        %v867 = vpop.f32.mrf.mxu0
        %v868 = vadd.f32 0.0, %v867
        %869 = vmatprep.mubr.f32.mxu0 %v755
        %870 = vmatmul.mubr.f32.gmra.mxu0 %v702
        %v871 = vpop.f32.mrf.mxu0
        %v872 = vadd.f32 0.0, %v871
        %v873 = vpop.f32.mrf.mxu0
        %v874 = vadd.f32 0.0, %v873
        %875 = vmatprep.mubr.f32.mxu0 %v757
        %876 = vmatmul.mubr.f32.gmra.mxu0 %v706
        %v877 = vpop.f32.mrf.mxu0
        %v878 = vadd.f32 0.0, %v877
        %v879 = vpop.f32.mrf.mxu0
        %v880 = vadd.f32 0.0, %v879
        %881 = vmatprep.mubr.f32.mxu0 %v759
        %882 = vmatmul.mubr.f32.gmra.mxu0 %v710
        %v883 = vpop.f32.mrf.mxu0
        %v884 = vadd.f32 0.0, %v883
        %v885 = vpop.f32.mrf.mxu0
        %v886 = vadd.f32 0.0, %v885
        %887 = vmatprep.mubr.f32.mxu0 %v761
        %888 = vmatmul.mubr.f32.gmra.mxu0 %v714
        %v889 = vpop.f32.mrf.mxu0
        %v890 = vadd.f32 0.0, %v889
        %v891 = vpop.f32.mrf.mxu0
        %v892 = vadd.f32 0.0, %v891
        %893 = vmatprep.mubr.f32.mxu0 %v763
        %894 = vmatmul.mubr.f32.gmra.mxu0 %v718
        %v895 = vpop.f32.mrf.mxu0
        %v896 = vadd.f32 0.0, %v895
        %v897 = vpop.f32.mrf.mxu0
        %v898 = vadd.f32 0.0, %v897
        %899 = vmatprep.mubr.f32.mxu0 %v765
        %900 = vmatmul.mubr.f32.gmra.mxu0 %v722
        %v901 = vpop.f32.mrf.mxu0
        %v902 = vadd.f32 0.0, %v901
        %v903 = vpop.f32.mrf.mxu0
        %v904 = vadd.f32 0.0, %v903
        %905 = vmatprep.mubr.f32.mxu0 %v767
        %906 = vmatmul.mubr.f32.gmra.mxu0 %v726
        %v907 = vpop.f32.mrf.mxu0
        %v908 = vadd.f32 0.0, %v907
        %v909 = vpop.f32.mrf.mxu0
        %v910 = vadd.f32 0.0, %v909
        %911 = vdwg.mxu0
        %912 = vmatprep.subr.mxu0 %v551
        %913 = vmatpush1.msra.mxu0 %v550
        %914 = vmatprep.subr.mxu0 %v547
        %915 = vmatpush1.msra.mxu0 %v546
        %916 = vmatprep.subr.mxu0 %v543
        %917 = vmatpush1.msra.mxu0 %v542
        %918 = vmatprep.subr.mxu0 %v539
        %919 = vmatpush1.msra.mxu0 %v538
        %920 = vmatprep.subr.mxu0 %v535
        %921 = vmatpush1.msra.mxu0 %v534
        %922 = vmatprep.subr.mxu0 %v531
        %923 = vmatpush1.msra.mxu0 %v530
        %924 = vmatprep.subr.mxu0 %v527
        %925 = vmatpush1.msra.mxu0 %v526
        %926 = vmatprep.subr.mxu0 %v523
        %927 = vmatpush1.msra.mxu0 %v522
        %928 = vmatprep.subr.mxu0 %v519
        %929 = vmatpush1.msra.mxu0 %v518
        %930 = vmatprep.subr.mxu0 %v515
        %931 = vmatpush1.msra.mxu0 %v514
        %932 = vmatprep.subr.mxu0 %v511
        %933 = vmatpush1.msra.mxu0 %v510
        %934 = vmatprep.subr.mxu0 %v507
        %935 = vmatpush1.msra.mxu0 %v506
        %936 = vmatprep.subr.mxu0 %v503
        %937 = vmatpush1.msra.mxu0 %v502
        %938 = vmatprep.subr.mxu0 %v499
        %939 = vmatpush1.msra.mxu0 %v498
        %940 = vmatprep.subr.mxu0 %v495
        %941 = vmatpush1.msra.mxu0 %v494
        %942 = vmatprep.subr.mxu0 %v491
        %943 = vmatpush1.msra.mxu0 %v490
        %944 = vmatprep.subr.mxu0 0.0
        %945 = vmatpush2.msra.mxu0 0.0
        %946 = vmatprep.subr.mxu0 0.0
        %947 = vmatpush2.msra.mxu0 0.0
        %948 = vmatprep.subr.mxu0 0.0
        %949 = vmatpush2.msra.mxu0 0.0
        %950 = vmatprep.subr.mxu0 0.0
        %951 = vmatpush2.msra.mxu0 0.0
        %952 = vmatprep.subr.mxu0 0.0
        %953 = vmatpush2.msra.mxu0 0.0
        %954 = vmatprep.subr.mxu0 0.0
        %955 = vmatpush2.msra.mxu0 0.0
        %956 = vmatprep.subr.mxu0 0.0
        %957 = vmatpush2.msra.mxu0 0.0
        %958 = vmatprep.subr.mxu0 0.0
        %959 = vmatpush2.msra.mxu0 0.0
        %960 = vmatprep.subr.mxu0 0.0
        %961 = vmatpush2.msra.mxu0 0.0
        %962 = vmatprep.subr.mxu0 0.0
        %963 = vmatpush2.msra.mxu0 0.0
        %964 = vmatprep.subr.mxu0 0.0
        %965 = vmatpush2.msra.mxu0 0.0
        %966 = vmatprep.subr.mxu0 0.0
        %967 = vmatpush2.msra.mxu0 0.0
        %968 = vmatprep.subr.mxu0 %v567
        %969 = vmatpush2.msra.mxu0 %v566
        %970 = vmatprep.subr.mxu0 %v563
        %971 = vmatpush2.msra.mxu0 %v562
        %972 = vmatprep.subr.mxu0 %v559
        %973 = vmatpush2.msra.mxu0 %v558
        %974 = vmatprep.subr.mxu0 %v555
        %975 = vmatpush2.msra.mxu0 %v554
        %976 = vmatprep.mubr.f32.mxu0 %v743
        %977 = vmatmul.mubr.f32.gmra.mxu0 %v677
        %v978 = vpop.f32.mrf.mxu0
        %v979 = vadd.f32 0.0, %v978
        %v980 = vpop.f32.mrf.mxu0
        %v981 = vadd.f32 0.0, %v980
        %982 = vmatprep.mubr.f32.mxu0 %v745
        %983 = vmatmul.mubr.f32.gmra.mxu0 %v682
        %v984 = vpop.f32.mrf.mxu0
        %v985 = vadd.f32 0.0, %v984
        %v986 = vpop.f32.mrf.mxu0
        %v987 = vadd.f32 0.0, %v986
        %988 = vmatprep.mubr.f32.mxu0 %v747
        %989 = vmatmul.mubr.f32.gmra.mxu0 %v686
        %v990 = vpop.f32.mrf.mxu0
        %v991 = vadd.f32 0.0, %v990
        %v992 = vpop.f32.mrf.mxu0
        %v993 = vadd.f32 0.0, %v992
        %994 = vmatprep.mubr.f32.mxu0 %v749
        %995 = vmatmul.mubr.f32.gmra.mxu0 %v690
        %v996 = vpop.f32.mrf.mxu0
        %v997 = vadd.f32 0.0, %v996
        %v998 = vpop.f32.mrf.mxu0
        %v999 = vadd.f32 0.0, %v998
        %1000 = vmatprep.mubr.f32.mxu0 %v751
        %1001 = vmatmul.mubr.f32.gmra.mxu0 %v694
        %v1002 = vpop.f32.mrf.mxu0
        %v1003 = vadd.f32 0.0, %v1002
        %v1004 = vpop.f32.mrf.mxu0
        %v1005 = vadd.f32 0.0, %v1004
        %1006 = vmatprep.mubr.f32.mxu0 %v753
        %1007 = vmatmul.mubr.f32.gmra.mxu0 %v698
        %v1008 = vpop.f32.mrf.mxu0
        %v1009 = vadd.f32 0.0, %v1008
        %v1010 = vpop.f32.mrf.mxu0
        %v1011 = vadd.f32 0.0, %v1010
        %1012 = vmatprep.mubr.f32.mxu0 %v755
        %1013 = vmatmul.mubr.f32.gmra.mxu0 %v702
        %v1014 = vpop.f32.mrf.mxu0
        %v1015 = vadd.f32 0.0, %v1014
        %v1016 = vpop.f32.mrf.mxu0
        %v1017 = vadd.f32 0.0, %v1016
        %1018 = vmatprep.mubr.f32.mxu0 %v757
        %1019 = vmatmul.mubr.f32.gmra.mxu0 %v706
        %v1020 = vpop.f32.mrf.mxu0
        %v1021 = vadd.f32 0.0, %v1020
        %v1022 = vpop.f32.mrf.mxu0
        %v1023 = vadd.f32 0.0, %v1022
        %1024 = vmatprep.mubr.f32.mxu0 %v759
        %1025 = vmatmul.mubr.f32.gmra.mxu0 %v710
        %v1026 = vpop.f32.mrf.mxu0
        %v1027 = vadd.f32 0.0, %v1026
        %v1028 = vpop.f32.mrf.mxu0
        %v1029 = vadd.f32 0.0, %v1028
        %1030 = vmatprep.mubr.f32.mxu0 %v761
        %1031 = vmatmul.mubr.f32.gmra.mxu0 %v714
        %v1032 = vpop.f32.mrf.mxu0
        %v1033 = vadd.f32 0.0, %v1032
        %v1034 = vpop.f32.mrf.mxu0
        %v1035 = vadd.f32 0.0, %v1034
        %1036 = vmatprep.mubr.f32.mxu0 %v763
        %1037 = vmatmul.mubr.f32.gmra.mxu0 %v718
        %v1038 = vpop.f32.mrf.mxu0
        %v1039 = vadd.f32 0.0, %v1038
        %v1040 = vpop.f32.mrf.mxu0
        %v1041 = vadd.f32 0.0, %v1040
        %1042 = vmatprep.mubr.f32.mxu0 %v765
        %1043 = vmatmul.mubr.f32.gmra.mxu0 %v722
        %v1044 = vpop.f32.mrf.mxu0
        %v1045 = vadd.f32 0.0, %v1044
        %v1046 = vpop.f32.mrf.mxu0
        %v1047 = vadd.f32 0.0, %v1046
        %1048 = vmatprep.mubr.f32.mxu0 %v767
        %1049 = vmatmul.mubr.f32.gmra.mxu0 %v726
        %v1050 = vpop.f32.mrf.mxu0
        %v1051 = vadd.f32 0.0, %v1050
        %v1052 = vpop.f32.mrf.mxu0
        %v1053 = vadd.f32 0.0, %v1052
        %1054 = vdwg.mxu0
        %v1055 = vsel %vm742, %v373, 0
        %v1057 = vsel %vm742, %v375, 0
        %v1059 = vsel %vm742, %v377, 0
        %v1061 = vsel %vm742, %v379, 0
        %v1063 = vsel %vm742, %v381, 0
        %v1065 = vsel %vm742, %v383, 0
        %v1067 = vsel %vm742, %v385, 0
        %v1069 = vsel %vm742, %v387, 0
        %v1071 = vsel %vm742, %v389, 0
        %v1073 = vsel %vm742, %v391, 0
        %v1075 = vsel %vm742, %v393, 0
        %v1077 = vsel %vm742, %v395, 0
        %v1079 = vsel %vm742, %v397, 0
        %1081 = vmatprep.subr.mxu0 %v469
        %1082 = vmatpush1.msra.mxu0 %v468
        %1083 = vmatprep.subr.mxu0 %v465
        %1084 = vmatpush1.msra.mxu0 %v464
        %1085 = vmatprep.subr.mxu0 %v461
        %1086 = vmatpush1.msra.mxu0 %v460
        %1087 = vmatprep.subr.mxu0 %v457
        %1088 = vmatpush1.msra.mxu0 %v456
        %1089 = vmatprep.subr.mxu0 %v453
        %1090 = vmatpush1.msra.mxu0 %v452
        %1091 = vmatprep.subr.mxu0 %v449
        %1092 = vmatpush1.msra.mxu0 %v448
        %1093 = vmatprep.subr.mxu0 %v445
        %1094 = vmatpush1.msra.mxu0 %v444
        %1095 = vmatprep.subr.mxu0 %v441
        %1096 = vmatpush1.msra.mxu0 %v440
        %1097 = vmatprep.subr.mxu0 %v437
        %1098 = vmatpush1.msra.mxu0 %v436
        %1099 = vmatprep.subr.mxu0 %v433
        %1100 = vmatpush1.msra.mxu0 %v432
        %1101 = vmatprep.subr.mxu0 %v429
        %1102 = vmatpush1.msra.mxu0 %v428
        %1103 = vmatprep.subr.mxu0 %v425
        %1104 = vmatpush1.msra.mxu0 %v424
        %1105 = vmatprep.subr.mxu0 %v421
        %1106 = vmatpush1.msra.mxu0 %v420
        %1107 = vmatprep.subr.mxu0 %v417
        %1108 = vmatpush1.msra.mxu0 %v416
        %1109 = vmatprep.subr.mxu0 %v413
        %1110 = vmatpush1.msra.mxu0 %v412
        %1111 = vmatprep.subr.mxu0 %v409
        %1112 = vmatpush1.msra.mxu0 %v408
        %1113 = vmatprep.subr.mxu0 0.0
        %1114 = vmatpush2.msra.mxu0 0.0
        %1115 = vmatprep.subr.mxu0 0.0
        %1116 = vmatpush2.msra.mxu0 0.0
        %1117 = vmatprep.subr.mxu0 0.0
        %1118 = vmatpush2.msra.mxu0 0.0
        %1119 = vmatprep.subr.mxu0 0.0
        %1120 = vmatpush2.msra.mxu0 0.0
        %1121 = vmatprep.subr.mxu0 0.0
        %1122 = vmatpush2.msra.mxu0 0.0
        %1123 = vmatprep.subr.mxu0 0.0
        %1124 = vmatpush2.msra.mxu0 0.0
        %1125 = vmatprep.subr.mxu0 0.0
        %1126 = vmatpush2.msra.mxu0 0.0
        %1127 = vmatprep.subr.mxu0 0.0
        %1128 = vmatpush2.msra.mxu0 0.0
        %1129 = vmatprep.subr.mxu0 0.0
        %1130 = vmatpush2.msra.mxu0 0.0
        %1131 = vmatprep.subr.mxu0 0.0
        %1132 = vmatpush2.msra.mxu0 0.0
        %1133 = vmatprep.subr.mxu0 0.0
        %1134 = vmatpush2.msra.mxu0 0.0
        %1135 = vmatprep.subr.mxu0 0.0
        %1136 = vmatpush2.msra.mxu0 0.0
        %1137 = vmatprep.subr.mxu0 %v485
        %1138 = vmatpush2.msra.mxu0 %v484
        %1139 = vmatprep.subr.mxu0 %v481
        %1140 = vmatpush2.msra.mxu0 %v480
        %1141 = vmatprep.subr.mxu0 %v477
        %1142 = vmatpush2.msra.mxu0 %v476
        %1143 = vmatprep.subr.mxu0 %v473
        %1144 = vmatpush2.msra.mxu0 %v472
        %1145 = vmatprep.mubr.f32.mxu0 %v1055
        %1146 = vmatmul.mubr.f32.gmra.mxu0 %v372
        %v1147 = vpop.f32.mrf.mxu0
        %v1148 = vadd.f32 %v836, %v1147
        %v1149 = vpop.f32.mrf.mxu0
        %v1150 = vadd.f32 %v838, %v1149
        %1151 = vmatprep.mubr.f32.mxu0 %v1057
        %1152 = vmatmul.mubr.f32.gmra.mxu0 %v374
        %v1153 = vpop.f32.mrf.mxu0
        %v1154 = vadd.f32 %v842, %v1153
        %v1155 = vpop.f32.mrf.mxu0
        %v1156 = vadd.f32 %v844, %v1155
        %1157 = vmatprep.mubr.f32.mxu0 %v1059
        %1158 = vmatmul.mubr.f32.gmra.mxu0 %v376
        %v1159 = vpop.f32.mrf.mxu0
        %v1160 = vadd.f32 %v848, %v1159
        %v1161 = vpop.f32.mrf.mxu0
        %v1162 = vadd.f32 %v850, %v1161
        %1163 = vmatprep.mubr.f32.mxu0 %v1061
        %1164 = vmatmul.mubr.f32.gmra.mxu0 %v378
        %v1165 = vpop.f32.mrf.mxu0
        %v1166 = vadd.f32 %v854, %v1165
        %v1167 = vpop.f32.mrf.mxu0
        %v1168 = vadd.f32 %v856, %v1167
        %1169 = vmatprep.mubr.f32.mxu0 %v1063
        %1170 = vmatmul.mubr.f32.gmra.mxu0 %v380
        %v1171 = vpop.f32.mrf.mxu0
        %v1172 = vadd.f32 %v860, %v1171
        %v1173 = vpop.f32.mrf.mxu0
        %v1174 = vadd.f32 %v862, %v1173
        %1175 = vmatprep.mubr.f32.mxu0 %v1065
        %1176 = vmatmul.mubr.f32.gmra.mxu0 %v382
        %v1177 = vpop.f32.mrf.mxu0
        %v1178 = vadd.f32 %v866, %v1177
        %v1179 = vpop.f32.mrf.mxu0
        %v1180 = vadd.f32 %v868, %v1179
        %1181 = vmatprep.mubr.f32.mxu0 %v1067
        %1182 = vmatmul.mubr.f32.gmra.mxu0 %v384
        %v1183 = vpop.f32.mrf.mxu0
        %v1184 = vadd.f32 %v872, %v1183
        %v1185 = vpop.f32.mrf.mxu0
        %v1186 = vadd.f32 %v874, %v1185
        %1187 = vmatprep.mubr.f32.mxu0 %v1069
        %1188 = vmatmul.mubr.f32.gmra.mxu0 %v386
        %v1189 = vpop.f32.mrf.mxu0
        %v1190 = vadd.f32 %v878, %v1189
        %v1191 = vpop.f32.mrf.mxu0
        %v1192 = vadd.f32 %v880, %v1191
        %1193 = vmatprep.mubr.f32.mxu0 %v1071
        %1194 = vmatmul.mubr.f32.gmra.mxu0 %v388
        %v1195 = vpop.f32.mrf.mxu0
        %v1196 = vadd.f32 %v884, %v1195
        %v1197 = vpop.f32.mrf.mxu0
        %v1198 = vadd.f32 %v886, %v1197
        %1199 = vmatprep.mubr.f32.mxu0 %v1073
        %1200 = vmatmul.mubr.f32.gmra.mxu0 %v390
        %v1201 = vpop.f32.mrf.mxu0
        %v1202 = vadd.f32 %v890, %v1201
        %v1203 = vpop.f32.mrf.mxu0
        %v1204 = vadd.f32 %v892, %v1203
        %1205 = vmatprep.mubr.f32.mxu0 %v1075
        %1206 = vmatmul.mubr.f32.gmra.mxu0 %v392
        %v1207 = vpop.f32.mrf.mxu0
        %v1208 = vadd.f32 %v896, %v1207
        %v1209 = vpop.f32.mrf.mxu0
        %v1210 = vadd.f32 %v898, %v1209
        %1211 = vmatprep.mubr.f32.mxu0 %v1077
        %1212 = vmatmul.mubr.f32.gmra.mxu0 %v394
        %v1213 = vpop.f32.mrf.mxu0
        %v1214 = vadd.f32 %v902, %v1213
        %v1215 = vpop.f32.mrf.mxu0
        %v1216 = vadd.f32 %v904, %v1215
        %1217 = vmatprep.mubr.f32.mxu0 %v1079
        %1218 = vmatmul.mubr.f32.gmra.mxu0 %v396
        %v1219 = vpop.f32.mrf.mxu0
        %v1220 = vadd.f32 %v908, %v1219
        %v1221 = vpop.f32.mrf.mxu0
        %v1222 = vadd.f32 %v910, %v1221
        %1223 = vdwg.mxu0
        %1224 = vmatprep.subr.mxu0 %v471
        %1225 = vmatpush1.msra.mxu0 %v470
        %1226 = vmatprep.subr.mxu0 %v467
        %1227 = vmatpush1.msra.mxu0 %v466
        %1228 = vmatprep.subr.mxu0 %v463
        %1229 = vmatpush1.msra.mxu0 %v462
        %1230 = vmatprep.subr.mxu0 %v459
        %1231 = vmatpush1.msra.mxu0 %v458
        %1232 = vmatprep.subr.mxu0 %v455
        %1233 = vmatpush1.msra.mxu0 %v454
        %1234 = vmatprep.subr.mxu0 %v451
        %1235 = vmatpush1.msra.mxu0 %v450
        %1236 = vmatprep.subr.mxu0 %v447
        %1237 = vmatpush1.msra.mxu0 %v446
        %1238 = vmatprep.subr.mxu0 %v443
        %1239 = vmatpush1.msra.mxu0 %v442
        %1240 = vmatprep.subr.mxu0 %v439
        %1241 = vmatpush1.msra.mxu0 %v438
        %1242 = vmatprep.subr.mxu0 %v435
        %1243 = vmatpush1.msra.mxu0 %v434
        %1244 = vmatprep.subr.mxu0 %v431
        %1245 = vmatpush1.msra.mxu0 %v430
        %1246 = vmatprep.subr.mxu0 %v427
        %1247 = vmatpush1.msra.mxu0 %v426
        %1248 = vmatprep.subr.mxu0 %v423
        %1249 = vmatpush1.msra.mxu0 %v422
        %1250 = vmatprep.subr.mxu0 %v419
        %1251 = vmatpush1.msra.mxu0 %v418
        %1252 = vmatprep.subr.mxu0 %v415
        %1253 = vmatpush1.msra.mxu0 %v414
        %1254 = vmatprep.subr.mxu0 %v411
        %1255 = vmatpush1.msra.mxu0 %v410
        %1256 = vmatprep.subr.mxu0 0.0
        %1257 = vmatpush2.msra.mxu0 0.0
        %1258 = vmatprep.subr.mxu0 0.0
        %1259 = vmatpush2.msra.mxu0 0.0
        %1260 = vmatprep.subr.mxu0 0.0
        %1261 = vmatpush2.msra.mxu0 0.0
        %1262 = vmatprep.subr.mxu0 0.0
        %1263 = vmatpush2.msra.mxu0 0.0
        %1264 = vmatprep.subr.mxu0 0.0
        %1265 = vmatpush2.msra.mxu0 0.0
        %1266 = vmatprep.subr.mxu0 0.0
        %1267 = vmatpush2.msra.mxu0 0.0
        %1268 = vmatprep.subr.mxu0 0.0
        %1269 = vmatpush2.msra.mxu0 0.0
        %1270 = vmatprep.subr.mxu0 0.0
        %1271 = vmatpush2.msra.mxu0 0.0
        %1272 = vmatprep.subr.mxu0 0.0
        %1273 = vmatpush2.msra.mxu0 0.0
        %1274 = vmatprep.subr.mxu0 0.0
        %1275 = vmatpush2.msra.mxu0 0.0
        %1276 = vmatprep.subr.mxu0 0.0
        %1277 = vmatpush2.msra.mxu0 0.0
        %1278 = vmatprep.subr.mxu0 0.0
        %1279 = vmatpush2.msra.mxu0 0.0
        %1280 = vmatprep.subr.mxu0 %v487
        %1281 = vmatpush2.msra.mxu0 %v486
        %1282 = vmatprep.subr.mxu0 %v483
        %1283 = vmatpush2.msra.mxu0 %v482
        %1284 = vmatprep.subr.mxu0 %v479
        %1285 = vmatpush2.msra.mxu0 %v478
        %1286 = vmatprep.subr.mxu0 %v475
        %1287 = vmatpush2.msra.mxu0 %v474
        %1288 = vmatprep.mubr.f32.mxu0 %v1055
        %1289 = vmatmul.mubr.f32.gmra.mxu0 %v372
        %v1290 = vpop.f32.mrf.mxu0
        %v1291 = vadd.f32 %v979, %v1290
        %v1292 = vpop.f32.mrf.mxu0
        %v1293 = vadd.f32 %v981, %v1292
        %1294 = vmatprep.mubr.f32.mxu0 %v1057
        %1295 = vmatmul.mubr.f32.gmra.mxu0 %v374
        %v1296 = vpop.f32.mrf.mxu0
        %v1297 = vadd.f32 %v985, %v1296
        %v1298 = vpop.f32.mrf.mxu0
        %v1299 = vadd.f32 %v987, %v1298
        %1300 = vmatprep.mubr.f32.mxu0 %v1059
        %1301 = vmatmul.mubr.f32.gmra.mxu0 %v376
        %v1302 = vpop.f32.mrf.mxu0
        %v1303 = vadd.f32 %v991, %v1302
        %v1304 = vpop.f32.mrf.mxu0
        %v1305 = vadd.f32 %v993, %v1304
        %1306 = vmatprep.mubr.f32.mxu0 %v1061
        %1307 = vmatmul.mubr.f32.gmra.mxu0 %v378
        %v1308 = vpop.f32.mrf.mxu0
        %v1309 = vadd.f32 %v997, %v1308
        %v1310 = vpop.f32.mrf.mxu0
        %v1311 = vadd.f32 %v999, %v1310
        %1312 = vmatprep.mubr.f32.mxu0 %v1063
        %1313 = vmatmul.mubr.f32.gmra.mxu0 %v380
        %v1314 = vpop.f32.mrf.mxu0
        %v1315 = vadd.f32 %v1003, %v1314
        %v1316 = vpop.f32.mrf.mxu0
        %v1317 = vadd.f32 %v1005, %v1316
        %1318 = vmatprep.mubr.f32.mxu0 %v1065
        %1319 = vmatmul.mubr.f32.gmra.mxu0 %v382
        %v1320 = vpop.f32.mrf.mxu0
        %v1321 = vadd.f32 %v1009, %v1320
        %v1322 = vpop.f32.mrf.mxu0
        %v1323 = vadd.f32 %v1011, %v1322
        %1324 = vmatprep.mubr.f32.mxu0 %v1067
        %1325 = vmatmul.mubr.f32.gmra.mxu0 %v384
        %v1326 = vpop.f32.mrf.mxu0
        %v1327 = vadd.f32 %v1015, %v1326
        %v1328 = vpop.f32.mrf.mxu0
        %v1329 = vadd.f32 %v1017, %v1328
        %1330 = vmatprep.mubr.f32.mxu0 %v1069
        %1331 = vmatmul.mubr.f32.gmra.mxu0 %v386
        %v1332 = vpop.f32.mrf.mxu0
        %v1333 = vadd.f32 %v1021, %v1332
        %v1334 = vpop.f32.mrf.mxu0
        %v1335 = vadd.f32 %v1023, %v1334
        %1336 = vmatprep.mubr.f32.mxu0 %v1071
        %1337 = vmatmul.mubr.f32.gmra.mxu0 %v388
        %v1338 = vpop.f32.mrf.mxu0
        %v1339 = vadd.f32 %v1027, %v1338
        %v1340 = vpop.f32.mrf.mxu0
        %v1341 = vadd.f32 %v1029, %v1340
        %1342 = vmatprep.mubr.f32.mxu0 %v1073
        %1343 = vmatmul.mubr.f32.gmra.mxu0 %v390
        %v1344 = vpop.f32.mrf.mxu0
        %v1345 = vadd.f32 %v1033, %v1344
        %v1346 = vpop.f32.mrf.mxu0
        %v1347 = vadd.f32 %v1035, %v1346
        %1348 = vmatprep.mubr.f32.mxu0 %v1075
        %1349 = vmatmul.mubr.f32.gmra.mxu0 %v392
        %v1350 = vpop.f32.mrf.mxu0
        %v1351 = vadd.f32 %v1039, %v1350
        %v1352 = vpop.f32.mrf.mxu0
        %v1353 = vadd.f32 %v1041, %v1352
        %1354 = vmatprep.mubr.f32.mxu0 %v1077
        %1355 = vmatmul.mubr.f32.gmra.mxu0 %v394
        %v1356 = vpop.f32.mrf.mxu0
        %v1357 = vadd.f32 %v1045, %v1356
        %v1358 = vpop.f32.mrf.mxu0
        %v1359 = vadd.f32 %v1047, %v1358
        %1360 = vmatprep.mubr.f32.mxu0 %v1079
        %1361 = vmatmul.mubr.f32.gmra.mxu0 %v396
        %v1362 = vpop.f32.mrf.mxu0
        %v1363 = vadd.f32 %v1051, %v1362
        %v1364 = vpop.f32.mrf.mxu0
        %v1365 = vadd.f32 %v1053, %v1364
        %1366 = vdwg.mxu0
        %vm1367 = vcmask 1045504
        %v1368 = vrot.slane %v372, 2
        %v1369 = vrot.slane %v374, 2
        %v1370 = vsel %vm1367, %v1368, %v1369
        %v1371 = vrot.slane %v373, 2
        %v1372 = vrot.slane %v375, 2
        %v1373 = vsel %vm1367, %v1371, %v1372
        %v1374 = vrot.slane %v376, 2
        %v1375 = vsel %vm1367, %v1369, %v1374
        %v1376 = vrot.slane %v377, 2
        %v1377 = vsel %vm1367, %v1372, %v1376
        %v1378 = vrot.slane %v378, 2
        %v1379 = vsel %vm1367, %v1374, %v1378
        %v1380 = vrot.slane %v379, 2
        %v1381 = vsel %vm1367, %v1376, %v1380
        %v1382 = vrot.slane %v380, 2
        %v1383 = vsel %vm1367, %v1378, %v1382
        %v1384 = vrot.slane %v381, 2
        %v1385 = vsel %vm1367, %v1380, %v1384
        %v1386 = vrot.slane %v382, 2
        %v1387 = vsel %vm1367, %v1382, %v1386
        %v1388 = vrot.slane %v383, 2
        %v1389 = vsel %vm1367, %v1384, %v1388
        %v1390 = vrot.slane %v384, 2
        %v1391 = vsel %vm1367, %v1386, %v1390
        %v1392 = vrot.slane %v385, 2
        %v1393 = vsel %vm1367, %v1388, %v1392
        %v1394 = vrot.slane %v386, 2
        %v1395 = vsel %vm1367, %v1390, %v1394
        %v1396 = vrot.slane %v387, 2
        %v1397 = vsel %vm1367, %v1392, %v1396
        %v1398 = vrot.slane %v388, 2
        %v1399 = vsel %vm1367, %v1394, %v1398
        %v1400 = vrot.slane %v389, 2
        %v1401 = vsel %vm1367, %v1396, %v1400
        %v1402 = vrot.slane %v390, 2
        %v1403 = vsel %vm1367, %v1398, %v1402
        %v1404 = vrot.slane %v391, 2
        %v1405 = vsel %vm1367, %v1400, %v1404
        %v1406 = vrot.slane %v392, 2
        %v1407 = vsel %vm1367, %v1402, %v1406
        %v1408 = vrot.slane %v393, 2
        %v1409 = vsel %vm1367, %v1404, %v1408
        %v1410 = vrot.slane %v394, 2
        %v1411 = vsel %vm1367, %v1406, %v1410
        %v1412 = vrot.slane %v395, 2
        %v1413 = vsel %vm1367, %v1408, %v1412
        %v1414 = vrot.slane %v396, 2
        %v1415 = vsel %vm1367, %v1410, %v1414
        %v1416 = vrot.slane %v397, 2
        %v1417 = vsel %vm1367, %v1412, %v1416
        %v1418 = vrot.slane %v406, 2
        %v1419 = vsel %vm1367, %v1414, %v1418
        %v1420 = vrot.slane %v407, 2
        %v1421 = vsel %vm1367, %v1416, %v1420
        %v1435 = vsel %vm742, %v1373, 0
        %v1437 = vsel %vm742, %v1377, 0
        %v1439 = vsel %vm742, %v1381, 0
        %v1441 = vsel %vm742, %v1385, 0
        %v1443 = vsel %vm742, %v1389, 0
        %v1445 = vsel %vm742, %v1393, 0
        %v1447 = vsel %vm742, %v1397, 0
        %v1449 = vsel %vm742, %v1401, 0
        %v1451 = vsel %vm742, %v1405, 0
        %v1453 = vsel %vm742, %v1409, 0
        %v1455 = vsel %vm742, %v1413, 0
        %v1457 = vsel %vm742, %v1417, 0
        %v1459 = vsel %vm742, %v1421, 0
        %1461 = vmatprep.subr.mxu0 %v629
        %1462 = vmatpush1.msra.mxu0 %v628
        %1463 = vmatprep.subr.mxu0 %v625
        %1464 = vmatpush1.msra.mxu0 %v624
        %1465 = vmatprep.subr.mxu0 %v621
        %1466 = vmatpush1.msra.mxu0 %v620
        %1467 = vmatprep.subr.mxu0 %v617
        %1468 = vmatpush1.msra.mxu0 %v616
        %1469 = vmatprep.subr.mxu0 %v613
        %1470 = vmatpush1.msra.mxu0 %v612
        %1471 = vmatprep.subr.mxu0 %v609
        %1472 = vmatpush1.msra.mxu0 %v608
        %1473 = vmatprep.subr.mxu0 %v605
        %1474 = vmatpush1.msra.mxu0 %v604
        %1475 = vmatprep.subr.mxu0 %v601
        %1476 = vmatpush1.msra.mxu0 %v600
        %1477 = vmatprep.subr.mxu0 %v597
        %1478 = vmatpush1.msra.mxu0 %v596
        %1479 = vmatprep.subr.mxu0 %v593
        %1480 = vmatpush1.msra.mxu0 %v592
        %1481 = vmatprep.subr.mxu0 %v589
        %1482 = vmatpush1.msra.mxu0 %v588
        %1483 = vmatprep.subr.mxu0 %v585
        %1484 = vmatpush1.msra.mxu0 %v584
        %1485 = vmatprep.subr.mxu0 %v581
        %1486 = vmatpush1.msra.mxu0 %v580
        %1487 = vmatprep.subr.mxu0 %v577
        %1488 = vmatpush1.msra.mxu0 %v576
        %1489 = vmatprep.subr.mxu0 %v573
        %1490 = vmatpush1.msra.mxu0 %v572
        %1491 = vmatprep.subr.mxu0 %v569
        %1492 = vmatpush1.msra.mxu0 %v568
        %1493 = vmatprep.subr.mxu0 0.0
        %1494 = vmatpush2.msra.mxu0 0.0
        %1495 = vmatprep.subr.mxu0 0.0
        %1496 = vmatpush2.msra.mxu0 0.0
        %1497 = vmatprep.subr.mxu0 0.0
        %1498 = vmatpush2.msra.mxu0 0.0
        %1499 = vmatprep.subr.mxu0 0.0
        %1500 = vmatpush2.msra.mxu0 0.0
        %1501 = vmatprep.subr.mxu0 0.0
        %1502 = vmatpush2.msra.mxu0 0.0
        %1503 = vmatprep.subr.mxu0 0.0
        %1504 = vmatpush2.msra.mxu0 0.0
        %1505 = vmatprep.subr.mxu0 0.0
        %1506 = vmatpush2.msra.mxu0 0.0
        %1507 = vmatprep.subr.mxu0 0.0
        %1508 = vmatpush2.msra.mxu0 0.0
        %1509 = vmatprep.subr.mxu0 0.0
        %1510 = vmatpush2.msra.mxu0 0.0
        %1511 = vmatprep.subr.mxu0 0.0
        %1512 = vmatpush2.msra.mxu0 0.0
        %1513 = vmatprep.subr.mxu0 0.0
        %1514 = vmatpush2.msra.mxu0 0.0
        %1515 = vmatprep.subr.mxu0 0.0
        %1516 = vmatpush2.msra.mxu0 0.0
        %1517 = vmatprep.subr.mxu0 %v645
        %1518 = vmatpush2.msra.mxu0 %v644
        %1519 = vmatprep.subr.mxu0 %v641
        %1520 = vmatpush2.msra.mxu0 %v640
        %1521 = vmatprep.subr.mxu0 %v637
        %1522 = vmatpush2.msra.mxu0 %v636
        %1523 = vmatprep.subr.mxu0 %v633
        %1524 = vmatpush2.msra.mxu0 %v632
        %1525 = vmatprep.mubr.f32.mxu0 %v1435
        %1526 = vmatmul.mubr.f32.gmra.mxu0 %v1370
        %v1527 = vpop.f32.mrf.mxu0
        %v1528 = vadd.f32 0.0, %v1527
        %v1529 = vpop.f32.mrf.mxu0
        %v1530 = vadd.f32 0.0, %v1529
        %1531 = vmatprep.mubr.f32.mxu0 %v1437
        %1532 = vmatmul.mubr.f32.gmra.mxu0 %v1375
        %v1533 = vpop.f32.mrf.mxu0
        %v1534 = vadd.f32 0.0, %v1533
        %v1535 = vpop.f32.mrf.mxu0
        %v1536 = vadd.f32 0.0, %v1535
        %1537 = vmatprep.mubr.f32.mxu0 %v1439
        %1538 = vmatmul.mubr.f32.gmra.mxu0 %v1379
        %v1539 = vpop.f32.mrf.mxu0
        %v1540 = vadd.f32 0.0, %v1539
        %v1541 = vpop.f32.mrf.mxu0
        %v1542 = vadd.f32 0.0, %v1541
        %1543 = vmatprep.mubr.f32.mxu0 %v1441
        %1544 = vmatmul.mubr.f32.gmra.mxu0 %v1383
        %v1545 = vpop.f32.mrf.mxu0
        %v1546 = vadd.f32 0.0, %v1545
        %v1547 = vpop.f32.mrf.mxu0
        %v1548 = vadd.f32 0.0, %v1547
        %1549 = vmatprep.mubr.f32.mxu0 %v1443
        %1550 = vmatmul.mubr.f32.gmra.mxu0 %v1387
        %v1551 = vpop.f32.mrf.mxu0
        %v1552 = vadd.f32 0.0, %v1551
        %v1553 = vpop.f32.mrf.mxu0
        %v1554 = vadd.f32 0.0, %v1553
        %1555 = vmatprep.mubr.f32.mxu0 %v1445
        %1556 = vmatmul.mubr.f32.gmra.mxu0 %v1391
        %v1557 = vpop.f32.mrf.mxu0
        %v1558 = vadd.f32 0.0, %v1557
        %v1559 = vpop.f32.mrf.mxu0
        %v1560 = vadd.f32 0.0, %v1559
        %1561 = vmatprep.mubr.f32.mxu0 %v1447
        %1562 = vmatmul.mubr.f32.gmra.mxu0 %v1395
        %v1563 = vpop.f32.mrf.mxu0
        %v1564 = vadd.f32 0.0, %v1563
        %v1565 = vpop.f32.mrf.mxu0
        %v1566 = vadd.f32 0.0, %v1565
        %1567 = vmatprep.mubr.f32.mxu0 %v1449
        %1568 = vmatmul.mubr.f32.gmra.mxu0 %v1399
        %v1569 = vpop.f32.mrf.mxu0
        %v1570 = vadd.f32 0.0, %v1569
        %v1571 = vpop.f32.mrf.mxu0
        %v1572 = vadd.f32 0.0, %v1571
        %1573 = vmatprep.mubr.f32.mxu0 %v1451
        %1574 = vmatmul.mubr.f32.gmra.mxu0 %v1403
        %v1575 = vpop.f32.mrf.mxu0
        %v1576 = vadd.f32 0.0, %v1575
        %v1577 = vpop.f32.mrf.mxu0
        %v1578 = vadd.f32 0.0, %v1577
        %1579 = vmatprep.mubr.f32.mxu0 %v1453
        %1580 = vmatmul.mubr.f32.gmra.mxu0 %v1407
        %v1581 = vpop.f32.mrf.mxu0
        %v1582 = vadd.f32 0.0, %v1581
        %v1583 = vpop.f32.mrf.mxu0
        %v1584 = vadd.f32 0.0, %v1583
        %1585 = vmatprep.mubr.f32.mxu0 %v1455
        %1586 = vmatmul.mubr.f32.gmra.mxu0 %v1411
        %v1587 = vpop.f32.mrf.mxu0
        %v1588 = vadd.f32 0.0, %v1587
        %v1589 = vpop.f32.mrf.mxu0
        %v1590 = vadd.f32 0.0, %v1589
        %1591 = vmatprep.mubr.f32.mxu0 %v1457
        %1592 = vmatmul.mubr.f32.gmra.mxu0 %v1415
        %v1593 = vpop.f32.mrf.mxu0
        %v1594 = vadd.f32 0.0, %v1593
        %v1595 = vpop.f32.mrf.mxu0
        %v1596 = vadd.f32 0.0, %v1595
        %1597 = vmatprep.mubr.f32.mxu0 %v1459
        %1598 = vmatmul.mubr.f32.gmra.mxu0 %v1419
        %v1599 = vpop.f32.mrf.mxu0
        %v1600 = vadd.f32 0.0, %v1599
        %v1601 = vpop.f32.mrf.mxu0
        %v1602 = vadd.f32 0.0, %v1601
        %1603 = vdwg.mxu0
        %1604 = vmatprep.subr.mxu0 %v631
        %1605 = vmatpush1.msra.mxu0 %v630
        %1606 = vmatprep.subr.mxu0 %v627
        %1607 = vmatpush1.msra.mxu0 %v626
        %1608 = vmatprep.subr.mxu0 %v623
        %1609 = vmatpush1.msra.mxu0 %v622
        %1610 = vmatprep.subr.mxu0 %v619
        %1611 = vmatpush1.msra.mxu0 %v618
        %1612 = vmatprep.subr.mxu0 %v615
        %1613 = vmatpush1.msra.mxu0 %v614
        %1614 = vmatprep.subr.mxu0 %v611
        %1615 = vmatpush1.msra.mxu0 %v610
        %1616 = vmatprep.subr.mxu0 %v607
        %1617 = vmatpush1.msra.mxu0 %v606
        %1618 = vmatprep.subr.mxu0 %v603
        %1619 = vmatpush1.msra.mxu0 %v602
        %1620 = vmatprep.subr.mxu0 %v599
        %1621 = vmatpush1.msra.mxu0 %v598
        %1622 = vmatprep.subr.mxu0 %v595
        %1623 = vmatpush1.msra.mxu0 %v594
        %1624 = vmatprep.subr.mxu0 %v591
        %1625 = vmatpush1.msra.mxu0 %v590
        %1626 = vmatprep.subr.mxu0 %v587
        %1627 = vmatpush1.msra.mxu0 %v586
        %1628 = vmatprep.subr.mxu0 %v583
        %1629 = vmatpush1.msra.mxu0 %v582
        %1630 = vmatprep.subr.mxu0 %v579
        %1631 = vmatpush1.msra.mxu0 %v578
        %1632 = vmatprep.subr.mxu0 %v575
        %1633 = vmatpush1.msra.mxu0 %v574
        %1634 = vmatprep.subr.mxu0 %v571
        %1635 = vmatpush1.msra.mxu0 %v570
        %1636 = vmatprep.subr.mxu0 0.0
        %1637 = vmatpush2.msra.mxu0 0.0
        %1638 = vmatprep.subr.mxu0 0.0
        %1639 = vmatpush2.msra.mxu0 0.0
        %1640 = vmatprep.subr.mxu0 0.0
        %1641 = vmatpush2.msra.mxu0 0.0
        %1642 = vmatprep.subr.mxu0 0.0
        %1643 = vmatpush2.msra.mxu0 0.0
        %1644 = vmatprep.subr.mxu0 0.0
        %1645 = vmatpush2.msra.mxu0 0.0
        %1646 = vmatprep.subr.mxu0 0.0
        %1647 = vmatpush2.msra.mxu0 0.0
        %1648 = vmatprep.subr.mxu0 0.0
        %1649 = vmatpush2.msra.mxu0 0.0
        %1650 = vmatprep.subr.mxu0 0.0
        %1651 = vmatpush2.msra.mxu0 0.0
        %1652 = vmatprep.subr.mxu0 0.0
        %1653 = vmatpush2.msra.mxu0 0.0
        %1654 = vmatprep.subr.mxu0 0.0
        %1655 = vmatpush2.msra.mxu0 0.0
        %1656 = vmatprep.subr.mxu0 0.0
        %1657 = vmatpush2.msra.mxu0 0.0
        %1658 = vmatprep.subr.mxu0 0.0
        %1659 = vmatpush2.msra.mxu0 0.0
        %1660 = vmatprep.subr.mxu0 %v647
        %1661 = vmatpush2.msra.mxu0 %v646
        %1662 = vmatprep.subr.mxu0 %v643
        %1663 = vmatpush2.msra.mxu0 %v642
        %1664 = vmatprep.subr.mxu0 %v639
        %1665 = vmatpush2.msra.mxu0 %v638
        %1666 = vmatprep.subr.mxu0 %v635
        %1667 = vmatpush2.msra.mxu0 %v634
        %1668 = vmatprep.mubr.f32.mxu0 %v1435
        %1669 = vmatmul.mubr.f32.gmra.mxu0 %v1370
        %v1670 = vpop.f32.mrf.mxu0
        %v1671 = vadd.f32 0.0, %v1670
        %v1672 = vpop.f32.mrf.mxu0
        %v1673 = vadd.f32 0.0, %v1672
        %1674 = vmatprep.mubr.f32.mxu0 %v1437
        %1675 = vmatmul.mubr.f32.gmra.mxu0 %v1375
        %v1676 = vpop.f32.mrf.mxu0
        %v1677 = vadd.f32 0.0, %v1676
        %v1678 = vpop.f32.mrf.mxu0
        %v1679 = vadd.f32 0.0, %v1678
        %1680 = vmatprep.mubr.f32.mxu0 %v1439
        %1681 = vmatmul.mubr.f32.gmra.mxu0 %v1379
        %v1682 = vpop.f32.mrf.mxu0
        %v1683 = vadd.f32 0.0, %v1682
        %v1684 = vpop.f32.mrf.mxu0
        %v1685 = vadd.f32 0.0, %v1684
        %1686 = vmatprep.mubr.f32.mxu0 %v1441
        %1687 = vmatmul.mubr.f32.gmra.mxu0 %v1383
        %v1688 = vpop.f32.mrf.mxu0
        %v1689 = vadd.f32 0.0, %v1688
        %v1690 = vpop.f32.mrf.mxu0
        %v1691 = vadd.f32 0.0, %v1690
        %1692 = vmatprep.mubr.f32.mxu0 %v1443
        %1693 = vmatmul.mubr.f32.gmra.mxu0 %v1387
        %v1694 = vpop.f32.mrf.mxu0
        %v1695 = vadd.f32 0.0, %v1694
        %v1696 = vpop.f32.mrf.mxu0
        %v1697 = vadd.f32 0.0, %v1696
        %1698 = vmatprep.mubr.f32.mxu0 %v1445
        %1699 = vmatmul.mubr.f32.gmra.mxu0 %v1391
        %v1700 = vpop.f32.mrf.mxu0
        %v1701 = vadd.f32 0.0, %v1700
        %v1702 = vpop.f32.mrf.mxu0
        %v1703 = vadd.f32 0.0, %v1702
        %1704 = vmatprep.mubr.f32.mxu0 %v1447
        %1705 = vmatmul.mubr.f32.gmra.mxu0 %v1395
        %v1706 = vpop.f32.mrf.mxu0
        %v1707 = vadd.f32 0.0, %v1706
        %v1708 = vpop.f32.mrf.mxu0
        %v1709 = vadd.f32 0.0, %v1708
        %1710 = vmatprep.mubr.f32.mxu0 %v1449
        %1711 = vmatmul.mubr.f32.gmra.mxu0 %v1399
        %v1712 = vpop.f32.mrf.mxu0
        %v1713 = vadd.f32 0.0, %v1712
        %v1714 = vpop.f32.mrf.mxu0
        %v1715 = vadd.f32 0.0, %v1714
        %1716 = vmatprep.mubr.f32.mxu0 %v1451
        %1717 = vmatmul.mubr.f32.gmra.mxu0 %v1403
        %v1718 = vpop.f32.mrf.mxu0
        %v1719 = vadd.f32 0.0, %v1718
        %v1720 = vpop.f32.mrf.mxu0
        %v1721 = vadd.f32 0.0, %v1720
        %1722 = vmatprep.mubr.f32.mxu0 %v1453
        %1723 = vmatmul.mubr.f32.gmra.mxu0 %v1407
        %v1724 = vpop.f32.mrf.mxu0
        %v1725 = vadd.f32 0.0, %v1724
        %v1726 = vpop.f32.mrf.mxu0
        %v1727 = vadd.f32 0.0, %v1726
        %1728 = vmatprep.mubr.f32.mxu0 %v1455
        %1729 = vmatmul.mubr.f32.gmra.mxu0 %v1411
        %v1730 = vpop.f32.mrf.mxu0
        %v1731 = vadd.f32 0.0, %v1730
        %v1732 = vpop.f32.mrf.mxu0
        %v1733 = vadd.f32 0.0, %v1732
        %1734 = vmatprep.mubr.f32.mxu0 %v1457
        %1735 = vmatmul.mubr.f32.gmra.mxu0 %v1415
        %v1736 = vpop.f32.mrf.mxu0
        %v1737 = vadd.f32 0.0, %v1736
        %v1738 = vpop.f32.mrf.mxu0
        %v1739 = vadd.f32 0.0, %v1738
        %1740 = vmatprep.mubr.f32.mxu0 %v1459
        %1741 = vmatmul.mubr.f32.gmra.mxu0 %v1419
        %v1742 = vpop.f32.mrf.mxu0
        %v1743 = vadd.f32 0.0, %v1742
        %v1744 = vpop.f32.mrf.mxu0
        %v1745 = vadd.f32 0.0, %v1744
        %1746 = vdwg.mxu0
        %v1747 = vadd.f32 %v1148, %v1528
        %v1748 = vadd.f32 %v1150, %v1530
        %v1749 = vadd.f32 %v1291, %v1671
        %v1750 = vadd.f32 %v1293, %v1673
        %v1751 = vadd.f32 %v1154, %v1534
        %v1752 = vadd.f32 %v1156, %v1536
        %v1753 = vadd.f32 %v1297, %v1677
        %v1754 = vadd.f32 %v1299, %v1679
        %v1755 = vadd.f32 %v1160, %v1540
        %v1756 = vadd.f32 %v1162, %v1542
        %v1757 = vadd.f32 %v1303, %v1683
        %v1758 = vadd.f32 %v1305, %v1685
        %v1759 = vadd.f32 %v1166, %v1546
        %v1760 = vadd.f32 %v1168, %v1548
        %v1761 = vadd.f32 %v1309, %v1689
        %v1762 = vadd.f32 %v1311, %v1691
        %v1763 = vadd.f32 %v1172, %v1552
        %v1764 = vadd.f32 %v1174, %v1554
        %v1765 = vadd.f32 %v1315, %v1695
        %v1766 = vadd.f32 %v1317, %v1697
        %v1767 = vadd.f32 %v1178, %v1558
        %v1768 = vadd.f32 %v1180, %v1560
        %v1769 = vadd.f32 %v1321, %v1701
        %v1770 = vadd.f32 %v1323, %v1703
        %v1771 = vadd.f32 %v1184, %v1564
        %v1772 = vadd.f32 %v1186, %v1566
        %v1773 = vadd.f32 %v1327, %v1707
        %v1774 = vadd.f32 %v1329, %v1709
        %v1775 = vadd.f32 %v1190, %v1570
        %v1776 = vadd.f32 %v1192, %v1572
        %v1777 = vadd.f32 %v1333, %v1713
        %v1778 = vadd.f32 %v1335, %v1715
        %v1779 = vadd.f32 %v1196, %v1576
        %v1780 = vadd.f32 %v1198, %v1578
        %v1781 = vadd.f32 %v1339, %v1719
        %v1782 = vadd.f32 %v1341, %v1721
        %v1783 = vadd.f32 %v1202, %v1582
        %v1784 = vadd.f32 %v1204, %v1584
        %v1785 = vadd.f32 %v1345, %v1725
        %v1786 = vadd.f32 %v1347, %v1727
        %v1787 = vadd.f32 %v1208, %v1588
        %v1788 = vadd.f32 %v1210, %v1590
        %v1789 = vadd.f32 %v1351, %v1731
        %v1790 = vadd.f32 %v1353, %v1733
        %v1791 = vadd.f32 %v1214, %v1594
        %v1792 = vadd.f32 %v1216, %v1596
        %v1793 = vadd.f32 %v1357, %v1737
        %v1794 = vadd.f32 %v1359, %v1739
        %v1795 = vadd.f32 %v1220, %v1600
        %v1796 = vadd.f32 %v1222, %v1602
        %v1797 = vadd.f32 %v1363, %v1743
        %v1798 = vadd.f32 %v1365, %v1745
        %v1799 = vmul.f32 %v1747, %v1747
        %v1800 = vmul.f32 %v1748, %v1748
        %v1801 = vmul.f32 %v1751, %v1751
        %v1802 = vmul.f32 %v1752, %v1752
        %v1803 = vmul.f32 %v1755, %v1755
        %v1804 = vmul.f32 %v1756, %v1756
        %v1805 = vmul.f32 %v1759, %v1759
        %v1806 = vmul.f32 %v1760, %v1760
        %v1807 = vmul.f32 %v1763, %v1763
        %v1808 = vmul.f32 %v1764, %v1764
        %v1809 = vmul.f32 %v1767, %v1767
        %v1810 = vmul.f32 %v1768, %v1768
        %v1811 = vmul.f32 %v1771, %v1771
        %v1812 = vmul.f32 %v1772, %v1772
        %v1813 = vmul.f32 %v1775, %v1775
        %v1814 = vmul.f32 %v1776, %v1776
        %v1815 = vmul.f32 %v1779, %v1779
        %v1816 = vmul.f32 %v1780, %v1780
        %v1817 = vmul.f32 %v1783, %v1783
        %v1818 = vmul.f32 %v1784, %v1784
        %v1819 = vmul.f32 %v1787, %v1787
        %v1820 = vmul.f32 %v1788, %v1788
        %v1821 = vmul.f32 %v1791, %v1791
        %v1822 = vmul.f32 %v1792, %v1792
        %v1823 = vmul.f32 %v1795, %v1795
        %v1824 = vmul.f32 %v1796, %v1796
        %v1825 = vmul.f32 %v1749, %v1749
        %v1826 = vmul.f32 %v1750, %v1750
        %v1827 = vmul.f32 %v1753, %v1753
        %v1828 = vmul.f32 %v1754, %v1754
        %v1829 = vmul.f32 %v1757, %v1757
        %v1830 = vmul.f32 %v1758, %v1758
        %v1831 = vmul.f32 %v1761, %v1761
        %v1832 = vmul.f32 %v1762, %v1762
        %v1833 = vmul.f32 %v1765, %v1765
        %v1834 = vmul.f32 %v1766, %v1766
        %v1835 = vmul.f32 %v1769, %v1769
        %v1836 = vmul.f32 %v1770, %v1770
        %v1837 = vmul.f32 %v1773, %v1773
        %v1838 = vmul.f32 %v1774, %v1774
        %v1839 = vmul.f32 %v1777, %v1777
        %v1840 = vmul.f32 %v1778, %v1778
        %v1841 = vmul.f32 %v1781, %v1781
        %v1842 = vmul.f32 %v1782, %v1782
        %v1843 = vmul.f32 %v1785, %v1785
        %v1844 = vmul.f32 %v1786, %v1786
        %v1845 = vmul.f32 %v1789, %v1789
        %v1846 = vmul.f32 %v1790, %v1790
        %v1847 = vmul.f32 %v1793, %v1793
        %v1848 = vmul.f32 %v1794, %v1794
        %v1849 = vmul.f32 %v1797, %v1797
        %v1850 = vmul.f32 %v1798, %v1798
        %v1851 = vadd.f32 %v1799, %v1825
        %v1852 = vadd.f32 %v1800, %v1826
        %v1853 = vadd.f32 %v1801, %v1827
        %v1854 = vadd.f32 %v1802, %v1828
        %v1855 = vadd.f32 %v1803, %v1829
        %v1856 = vadd.f32 %v1804, %v1830
        %v1857 = vadd.f32 %v1805, %v1831
        %v1858 = vadd.f32 %v1806, %v1832
        %v1859 = vadd.f32 %v1807, %v1833
        %v1860 = vadd.f32 %v1808, %v1834
        %v1861 = vadd.f32 %v1809, %v1835
        %v1862 = vadd.f32 %v1810, %v1836
        %v1863 = vadd.f32 %v1811, %v1837
        %v1864 = vadd.f32 %v1812, %v1838
        %v1865 = vadd.f32 %v1813, %v1839
        %v1866 = vadd.f32 %v1814, %v1840
        %v1867 = vadd.f32 %v1815, %v1841
        %v1868 = vadd.f32 %v1816, %v1842
        %v1869 = vadd.f32 %v1817, %v1843
        %v1870 = vadd.f32 %v1818, %v1844
        %v1871 = vadd.f32 %v1819, %v1845
        %v1872 = vadd.f32 %v1820, %v1846
        %v1873 = vadd.f32 %v1821, %v1847
        %v1874 = vadd.f32 %v1822, %v1848
        %v1875 = vadd.f32 %v1823, %v1849
        %v1876 = vadd.f32 %v1824, %v1850
        %v1877 = vld [vmem:[%s3] sm:$0xff]
        %v1878 = vld [vmem:[%s3 + $0x8] sm:$0xff]
        %v1879 = vld [vmem:[%s3 + $0x10] sm:$0xff]
        %v1880 = vld [vmem:[%s3 + $0x18] sm:$0xff]
        %v1881 = vld [vmem:[%s3 + $0x20] sm:$0xff]
        %v1882 = vld [vmem:[%s3 + $0x28] sm:$0xff]
        %v1883 = vld [vmem:[%s3 + $0x30] sm:$0xff]
        %v1884 = vld [vmem:[%s3 + $0x38] sm:$0xff]
        %v1885 = vld [vmem:[%s3 + $0x40] sm:$0xff]
        %v1886 = vld [vmem:[%s3 + $0x48] sm:$0xff]
        %v1887 = vld [vmem:[%s3 + $0x50] sm:$0xff]
        %v1888 = vld [vmem:[%s3 + $0x58] sm:$0xff]
        %v1889 = vld [vmem:[%s3 + $0x60] sm:$0xff]
        %v1890 = vld [vmem:[%s3 + $0x68] sm:$0xff]
        %v1891 = vld [vmem:[%s3 + $0x70] sm:$0xff]
        %v1892 = vld [vmem:[%s3 + $0x78] sm:$0xff]
        %v1893 = vld [vmem:[%s3 + $0x80] sm:$0xff]
        %v1894 = vld [vmem:[%s3 + $0x88] sm:$0xff]
        %v1895 = vld [vmem:[%s3 + $0x90] sm:$0xff]
        %v1896 = vld [vmem:[%s3 + $0x98] sm:$0xff]
        %v1897 = vld [vmem:[%s3 + $0xa0] sm:$0xff]
        %v1898 = vld [vmem:[%s3 + $0xa8] sm:$0xff]
        %v1899 = vld [vmem:[%s3 + $0xb0] sm:$0xff]
        %v1900 = vld [vmem:[%s3 + $0xb8] sm:$0xff]
        %v1901 = vld [vmem:[%s3 + $0xc0] sm:$0xff]
        %v1902 = vld [vmem:[%s3 + $0xc8] sm:$0xff]
        %v1903 = vld [vmem:[%s3 + $0xd0] sm:$0xff]
        %v1904 = vld [vmem:[%s3 + $0xd8] sm:$0xff]
        %v1905 = vld [vmem:[%s3 + $0xe0] sm:$0xff]
        %v1906 = vld [vmem:[%s3 + $0xe8] sm:$0xff]
        %v1907 = vld [vmem:[%s3 + $0xf0] sm:$0xff]
        %v1908 = vld [vmem:[%s3 + $0xf8] sm:$0xff]
        %v1909 = vld [vmem:[%s3 + $0x100] sm:$0xff]
        %v1910 = vld [vmem:[%s3 + $0x108] sm:$0xff]
        %v1911 = vld [vmem:[%s3 + $0x110] sm:$0xff]
        %v1912 = vld [vmem:[%s3 + $0x118] sm:$0xff]
        %v1913 = vld [vmem:[%s3 + $0x120] sm:$0xff]
        %v1914 = vld [vmem:[%s3 + $0x128] sm:$0xff]
        %v1915 = vld [vmem:[%s3 + $0x130] sm:$0xff]
        %v1916 = vld [vmem:[%s3 + $0x138] sm:$0xff]
        %v1917 = vld [vmem:[%s3 + $0x140] sm:$0xff]
        %v1918 = vld [vmem:[%s3 + $0x148] sm:$0xff]
        %v1919 = vld [vmem:[%s3 + $0x150] sm:$0xff]
        %v1920 = vld [vmem:[%s3 + $0x158] sm:$0xff]
        %v1921 = vld [vmem:[%s3 + $0x160] sm:$0xff]
        %v1922 = vld [vmem:[%s3 + $0x168] sm:$0xff]
        %v1923 = vld [vmem:[%s3 + $0x170] sm:$0xff]
        %v1924 = vld [vmem:[%s3 + $0x178] sm:$0xff]
        %v1925 = vld [vmem:[%s3 + $0x180] sm:$0xff]
        %v1926 = vld [vmem:[%s3 + $0x188] sm:$0xff]
        %v1927 = vld [vmem:[%s3 + $0x190] sm:$0xff]
        %v1928 = vld [vmem:[%s3 + $0x198] sm:$0xff]
        %v1929 = vld [vmem:[%s3 + $0x1a0] sm:$0xff]
        %v1930 = vld [vmem:[%s3 + $0x1a8] sm:$0xff]
        %v1931 = vld [vmem:[%s3 + $0x1b0] sm:$0xff]
        %v1932 = vld [vmem:[%s3 + $0x1b8] sm:$0xff]
        %v1933 = vld [vmem:[%s3 + $0x1c0] sm:$0xff]
        %v1934 = vld [vmem:[%s3 + $0x1c8] sm:$0xff]
        %v1935 = vld [vmem:[%s3 + $0x1d0] sm:$0xff]
        %v1936 = vld [vmem:[%s3 + $0x1d8] sm:$0xff]
        %v1937 = vld [vmem:[%s3 + $0x1e0] sm:$0xff]
        %v1938 = vld [vmem:[%s3 + $0x1e8] sm:$0xff]
        %v1939 = vld [vmem:[%s3 + $0x1f0] sm:$0xff]
        %v1940 = vld [vmem:[%s3 + $0x1f8] sm:$0xff]
        %1941 = vmatprep.subr.mxu0 %v1908
        %1942 = vmatpush1.msra.mxu0 %v1907
        %1943 = vmatprep.subr.mxu0 %v1906
        %1944 = vmatpush1.msra.mxu0 %v1905
        %1945 = vmatprep.subr.mxu0 %v1904
        %1946 = vmatpush1.msra.mxu0 %v1903
        %1947 = vmatprep.subr.mxu0 %v1902
        %1948 = vmatpush1.msra.mxu0 %v1901
        %1949 = vmatprep.subr.mxu0 %v1900
        %1950 = vmatpush1.msra.mxu0 %v1899
        %1951 = vmatprep.subr.mxu0 %v1898
        %1952 = vmatpush1.msra.mxu0 %v1897
        %1953 = vmatprep.subr.mxu0 %v1896
        %1954 = vmatpush1.msra.mxu0 %v1895
        %1955 = vmatprep.subr.mxu0 %v1894
        %1956 = vmatpush1.msra.mxu0 %v1893
        %1957 = vmatprep.subr.mxu0 %v1892
        %1958 = vmatpush1.msra.mxu0 %v1891
        %1959 = vmatprep.subr.mxu0 %v1890
        %1960 = vmatpush1.msra.mxu0 %v1889
        %1961 = vmatprep.subr.mxu0 %v1888
        %1962 = vmatpush1.msra.mxu0 %v1887
        %1963 = vmatprep.subr.mxu0 %v1886
        %1964 = vmatpush1.msra.mxu0 %v1885
        %1965 = vmatprep.subr.mxu0 %v1884
        %1966 = vmatpush1.msra.mxu0 %v1883
        %1967 = vmatprep.subr.mxu0 %v1882
        %1968 = vmatpush1.msra.mxu0 %v1881
        %1969 = vmatprep.subr.mxu0 %v1880
        %1970 = vmatpush1.msra.mxu0 %v1879
        %1971 = vmatprep.subr.mxu0 %v1878
        %1972 = vmatpush1.msra.mxu0 %v1877
        %1973 = vmatprep.subr.mxu0 %v1940
        %1974 = vmatpush2.msra.mxu0 %v1939
        %1975 = vmatprep.subr.mxu0 %v1938
        %1976 = vmatpush2.msra.mxu0 %v1937
        %1977 = vmatprep.subr.mxu0 %v1936
        %1978 = vmatpush2.msra.mxu0 %v1935
        %1979 = vmatprep.subr.mxu0 %v1934
        %1980 = vmatpush2.msra.mxu0 %v1933
        %1981 = vmatprep.subr.mxu0 %v1932
        %1982 = vmatpush2.msra.mxu0 %v1931
        %1983 = vmatprep.subr.mxu0 %v1930
        %1984 = vmatpush2.msra.mxu0 %v1929
        %1985 = vmatprep.subr.mxu0 %v1928
        %1986 = vmatpush2.msra.mxu0 %v1927
        %1987 = vmatprep.subr.mxu0 %v1926
        %1988 = vmatpush2.msra.mxu0 %v1925
        %1989 = vmatprep.subr.mxu0 %v1924
        %1990 = vmatpush2.msra.mxu0 %v1923
        %1991 = vmatprep.subr.mxu0 %v1922
        %1992 = vmatpush2.msra.mxu0 %v1921
        %1993 = vmatprep.subr.mxu0 %v1920
        %1994 = vmatpush2.msra.mxu0 %v1919
        %1995 = vmatprep.subr.mxu0 %v1918
        %1996 = vmatpush2.msra.mxu0 %v1917
        %1997 = vmatprep.subr.mxu0 %v1916
        %1998 = vmatpush2.msra.mxu0 %v1915
        %1999 = vmatprep.subr.mxu0 %v1914
        %2000 = vmatpush2.msra.mxu0 %v1913
        %2001 = vmatprep.subr.mxu0 %v1912
        %2002 = vmatpush2.msra.mxu0 %v1911
        %2003 = vmatprep.subr.mxu0 %v1910
        %2004 = vmatpush2.msra.mxu0 %v1909
        %2005 = vmatprep.mubr.f32.mxu0 %v1852
        %2006 = vmatmul.mubr.f32.gmra.mxu0 %v1851
        %v2007 = vpop.f32.mrf.mxu0
        %v2008 = vadd.f32 0.0, %v2007
        %v2009 = vpop.f32.mrf.mxu0
        %v2010 = vadd.f32 0.0, %v2009
        %2011 = vmatprep.mubr.f32.mxu0 %v1854
        %2012 = vmatmul.mubr.f32.gmra.mxu0 %v1853
        %v2013 = vpop.f32.mrf.mxu0
        %v2014 = vadd.f32 0.0, %v2013
        %v2015 = vpop.f32.mrf.mxu0
        %v2016 = vadd.f32 0.0, %v2015
        %2017 = vmatprep.mubr.f32.mxu0 %v1856
        %2018 = vmatmul.mubr.f32.gmra.mxu0 %v1855
        %v2019 = vpop.f32.mrf.mxu0
        %v2020 = vadd.f32 0.0, %v2019
        %v2021 = vpop.f32.mrf.mxu0
        %v2022 = vadd.f32 0.0, %v2021
        %2023 = vmatprep.mubr.f32.mxu0 %v1858
        %2024 = vmatmul.mubr.f32.gmra.mxu0 %v1857
        %v2025 = vpop.f32.mrf.mxu0
        %v2026 = vadd.f32 0.0, %v2025
        %v2027 = vpop.f32.mrf.mxu0
        %v2028 = vadd.f32 0.0, %v2027
        %2029 = vmatprep.mubr.f32.mxu0 %v1860
        %2030 = vmatmul.mubr.f32.gmra.mxu0 %v1859
        %v2031 = vpop.f32.mrf.mxu0
        %v2032 = vadd.f32 0.0, %v2031
        %v2033 = vpop.f32.mrf.mxu0
        %v2034 = vadd.f32 0.0, %v2033
        %2035 = vmatprep.mubr.f32.mxu0 %v1862
        %2036 = vmatmul.mubr.f32.gmra.mxu0 %v1861
        %v2037 = vpop.f32.mrf.mxu0
        %v2038 = vadd.f32 0.0, %v2037
        %v2039 = vpop.f32.mrf.mxu0
        %v2040 = vadd.f32 0.0, %v2039
        %2041 = vmatprep.mubr.f32.mxu0 %v1864
        %2042 = vmatmul.mubr.f32.gmra.mxu0 %v1863
        %v2043 = vpop.f32.mrf.mxu0
        %v2044 = vadd.f32 0.0, %v2043
        %v2045 = vpop.f32.mrf.mxu0
        %v2046 = vadd.f32 0.0, %v2045
        %2047 = vmatprep.mubr.f32.mxu0 %v1866
        %2048 = vmatmul.mubr.f32.gmra.mxu0 %v1865
        %v2049 = vpop.f32.mrf.mxu0
        %v2050 = vadd.f32 0.0, %v2049
        %v2051 = vpop.f32.mrf.mxu0
        %v2052 = vadd.f32 0.0, %v2051
        %2053 = vmatprep.mubr.f32.mxu0 %v1868
        %2054 = vmatmul.mubr.f32.gmra.mxu0 %v1867
        %v2055 = vpop.f32.mrf.mxu0
        %v2056 = vadd.f32 0.0, %v2055
        %v2057 = vpop.f32.mrf.mxu0
        %v2058 = vadd.f32 0.0, %v2057
        %2059 = vmatprep.mubr.f32.mxu0 %v1870
        %2060 = vmatmul.mubr.f32.gmra.mxu0 %v1869
        %v2061 = vpop.f32.mrf.mxu0
        %v2062 = vadd.f32 0.0, %v2061
        %v2063 = vpop.f32.mrf.mxu0
        %v2064 = vadd.f32 0.0, %v2063
        %2065 = vmatprep.mubr.f32.mxu0 %v1872
        %2066 = vmatmul.mubr.f32.gmra.mxu0 %v1871
        %v2067 = vpop.f32.mrf.mxu0
        %v2068 = vadd.f32 0.0, %v2067
        %v2069 = vpop.f32.mrf.mxu0
        %v2070 = vadd.f32 0.0, %v2069
        %2071 = vmatprep.mubr.f32.mxu0 %v1874
        %2072 = vmatmul.mubr.f32.gmra.mxu0 %v1873
        %v2073 = vpop.f32.mrf.mxu0
        %v2074 = vadd.f32 0.0, %v2073
        %v2075 = vpop.f32.mrf.mxu0
        %v2076 = vadd.f32 0.0, %v2075
        %2077 = vmatprep.mubr.f32.mxu0 %v1876
        %2078 = vmatmul.mubr.f32.gmra.mxu0 %v1875
        %v2079 = vpop.f32.mrf.mxu0
        %v2080 = vadd.f32 0.0, %v2079
        %v2081 = vpop.f32.mrf.mxu0
        %v2082 = vadd.f32 0.0, %v2081
        %2083 = vdwg.mxu0
        %v2084 = vadd.f32 %v2010, 1e-06
        %v2085 = vadd.f32 %v2016, 1e-06
        %v2086 = vadd.f32 %v2022, 1e-06
        %v2087 = vadd.f32 %v2028, 1e-06
        %v2088 = vadd.f32 %v2034, 1e-06
        %v2089 = vadd.f32 %v2040, 1e-06
        %v2090 = vadd.f32 %v2046, 1e-06
        %v2091 = vadd.f32 %v2052, 1e-06
        %v2092 = vadd.f32 %v2058, 1e-06
        %v2093 = vadd.f32 %v2064, 1e-06
        %v2094 = vadd.f32 %v2070, 1e-06
        %v2095 = vadd.f32 %v2076, 1e-06
        %v2096 = vadd.f32 %v2082, 1e-06
        %v2097 = vlog2.pop %v2084
        %v2098 = vmul.f32 %v2097, 0.6931472
        %v2099 = vlog2.pop %v2085
        %v2100 = vmul.f32 %v2099, 0.6931472
        %v2101 = vlog2.pop %v2086
        %v2102 = vmul.f32 %v2101, 0.6931472
        %v2103 = vlog2.pop %v2087
        %v2104 = vmul.f32 %v2103, 0.6931472
        %v2105 = vlog2.pop %v2088
        %v2106 = vmul.f32 %v2105, 0.6931472
        %v2107 = vlog2.pop %v2089
        %v2108 = vmul.f32 %v2107, 0.6931472
        %v2109 = vlog2.pop %v2090
        %v2110 = vmul.f32 %v2109, 0.6931472
        %v2111 = vlog2.pop %v2091
        %v2112 = vmul.f32 %v2111, 0.6931472
        %v2113 = vlog2.pop %v2092
        %v2114 = vmul.f32 %v2113, 0.6931472
        %v2115 = vlog2.pop %v2093
        %v2116 = vmul.f32 %v2115, 0.6931472
        %v2117 = vlog2.pop %v2094
        %v2118 = vmul.f32 %v2117, 0.6931472
        %v2119 = vlog2.pop %v2095
        %v2120 = vmul.f32 %v2119, 0.6931472
        %v2121 = vlog2.pop %v2096
        %v2122 = vmul.f32 %v2121, 0.6931472
        %v2123 = vld [vmem:[%s4] sm:$0xff]
        %v2124 = vld [vmem:[%s4 + $0x8] sm:$0xff]
        %v2125 = vld [vmem:[%s4 + $0x10] sm:$0xff]
        %v2126 = vld [vmem:[%s4 + $0x18] sm:$0xff]
        %v2127 = vld [vmem:[%s4 + $0x20] sm:$0xff]
        %v2128 = vld [vmem:[%s4 + $0x28] sm:$0xff]
        %v2129 = vld [vmem:[%s4 + $0x30] sm:$0xff]
        %v2130 = vld [vmem:[%s4 + $0x38] sm:$0xff]
        %v2131 = vld [vmem:[%s4 + $0x40] sm:$0xff]
        %v2132 = vld [vmem:[%s4 + $0x48] sm:$0xff]
        %v2133 = vld [vmem:[%s4 + $0x50] sm:$0xff]
        %v2134 = vld [vmem:[%s4 + $0x58] sm:$0xff]
        %v2135 = vld [vmem:[%s4 + $0x60] sm:$0xff]
        %v2136 = vld [vmem:[%s4 + $0x68] sm:$0xff]
        %v2137 = vld [vmem:[%s4 + $0x70] sm:$0xff]
        %v2138 = vld [vmem:[%s4 + $0x78] sm:$0xff]
        %2139 = vmatprep.subr.mxu0 0.0
        %2140 = vmatpush1.msra.mxu0 %v2138
        %2141 = vmatprep.subr.mxu0 0.0
        %2142 = vmatpush1.msra.mxu0 %v2137
        %2143 = vmatprep.subr.mxu0 0.0
        %2144 = vmatpush1.msra.mxu0 %v2136
        %2145 = vmatprep.subr.mxu0 0.0
        %2146 = vmatpush1.msra.mxu0 %v2135
        %2147 = vmatprep.subr.mxu0 0.0
        %2148 = vmatpush1.msra.mxu0 %v2134
        %2149 = vmatprep.subr.mxu0 0.0
        %2150 = vmatpush1.msra.mxu0 %v2133
        %2151 = vmatprep.subr.mxu0 0.0
        %2152 = vmatpush1.msra.mxu0 %v2132
        %2153 = vmatprep.subr.mxu0 0.0
        %2154 = vmatpush1.msra.mxu0 %v2131
        %2155 = vmatprep.subr.mxu0 0.0
        %2156 = vmatpush1.msra.mxu0 %v2130
        %2157 = vmatprep.subr.mxu0 0.0
        %2158 = vmatpush1.msra.mxu0 %v2129
        %2159 = vmatprep.subr.mxu0 0.0
        %2160 = vmatpush1.msra.mxu0 %v2128
        %2161 = vmatprep.subr.mxu0 0.0
        %2162 = vmatpush1.msra.mxu0 %v2127
        %2163 = vmatprep.subr.mxu0 0.0
        %2164 = vmatpush1.msra.mxu0 %v2126
        %2165 = vmatprep.subr.mxu0 0.0
        %2166 = vmatpush1.msra.mxu0 %v2125
        %2167 = vmatprep.subr.mxu0 0.0
        %2168 = vmatpush1.msra.mxu0 %v2124
        %2169 = vmatprep.subr.mxu0 0.0
        %2170 = vmatpush1.msra.mxu0 %v2123
        %2171 = vmatprep.subr.mxu0 0.0
        %2172 = vmatpush2.msra.mxu0 0.0
        %2173 = vmatprep.subr.mxu0 0.0
        %2174 = vmatpush2.msra.mxu0 0.0
        %2175 = vmatprep.subr.mxu0 0.0
        %2176 = vmatpush2.msra.mxu0 0.0
        %2177 = vmatprep.subr.mxu0 0.0
        %2178 = vmatpush2.msra.mxu0 0.0
        %2179 = vmatprep.subr.mxu0 0.0
        %2180 = vmatpush2.msra.mxu0 0.0
        %2181 = vmatprep.subr.mxu0 0.0
        %2182 = vmatpush2.msra.mxu0 0.0
        %2183 = vmatprep.subr.mxu0 0.0
        %2184 = vmatpush2.msra.mxu0 0.0
        %2185 = vmatprep.subr.mxu0 0.0
        %2186 = vmatpush2.msra.mxu0 0.0
        %2187 = vmatprep.subr.mxu0 0.0
        %2188 = vmatpush2.msra.mxu0 0.0
        %2189 = vmatprep.subr.mxu0 0.0
        %2190 = vmatpush2.msra.mxu0 0.0
        %2191 = vmatprep.subr.mxu0 0.0
        %2192 = vmatpush2.msra.mxu0 0.0
        %2193 = vmatprep.subr.mxu0 0.0
        %2194 = vmatpush2.msra.mxu0 0.0
        %2195 = vmatprep.subr.mxu0 0.0
        %2196 = vmatpush2.msra.mxu0 0.0
        %2197 = vmatprep.subr.mxu0 0.0
        %2198 = vmatpush2.msra.mxu0 0.0
        %2199 = vmatprep.subr.mxu0 0.0
        %2200 = vmatpush2.msra.mxu0 0.0
        %2201 = vmatprep.subr.mxu0 0.0
        %2202 = vmatpush2.msra.mxu0 0.0
        %2203 = vmatprep.mubr.f32.mxu0 0.0
        %2204 = vmatmul.mubr.f32.gmra.mxu0 %v2098
        %v2205 = vpop.f32.mrf.mxu0
        %v2206 = vadd.f32 0.0, %v2205
        %v2207 = vpop.f32.mrf.mxu0
        %2208 = vmatprep.mubr.f32.mxu0 0.0
        %2209 = vmatmul.mubr.f32.gmra.mxu0 %v2100
        %v2210 = vpop.f32.mrf.mxu0
        %v2211 = vadd.f32 0.0, %v2210
        %v2212 = vpop.f32.mrf.mxu0
        %2213 = vmatprep.mubr.f32.mxu0 0.0
        %2214 = vmatmul.mubr.f32.gmra.mxu0 %v2102
        %v2215 = vpop.f32.mrf.mxu0
        %v2216 = vadd.f32 0.0, %v2215
        %v2217 = vpop.f32.mrf.mxu0
        %2218 = vmatprep.mubr.f32.mxu0 0.0
        %2219 = vmatmul.mubr.f32.gmra.mxu0 %v2104
        %v2220 = vpop.f32.mrf.mxu0
        %v2221 = vadd.f32 0.0, %v2220
        %v2222 = vpop.f32.mrf.mxu0
        %2223 = vmatprep.mubr.f32.mxu0 0.0
        %2224 = vmatmul.mubr.f32.gmra.mxu0 %v2106
        %v2225 = vpop.f32.mrf.mxu0
        %v2226 = vadd.f32 0.0, %v2225
        %v2227 = vpop.f32.mrf.mxu0
        %2228 = vmatprep.mubr.f32.mxu0 0.0
        %2229 = vmatmul.mubr.f32.gmra.mxu0 %v2108
        %v2230 = vpop.f32.mrf.mxu0
        %v2231 = vadd.f32 0.0, %v2230
        %v2232 = vpop.f32.mrf.mxu0
        %2233 = vmatprep.mubr.f32.mxu0 0.0
        %2234 = vmatmul.mubr.f32.gmra.mxu0 %v2110
        %v2235 = vpop.f32.mrf.mxu0
        %v2236 = vadd.f32 0.0, %v2235
        %v2237 = vpop.f32.mrf.mxu0
        %2238 = vmatprep.mubr.f32.mxu0 0.0
        %2239 = vmatmul.mubr.f32.gmra.mxu0 %v2112
        %v2240 = vpop.f32.mrf.mxu0
        %v2241 = vadd.f32 0.0, %v2240
        %v2242 = vpop.f32.mrf.mxu0
        %2243 = vmatprep.mubr.f32.mxu0 0.0
        %2244 = vmatmul.mubr.f32.gmra.mxu0 %v2114
        %v2245 = vpop.f32.mrf.mxu0
        %v2246 = vadd.f32 0.0, %v2245
        %v2247 = vpop.f32.mrf.mxu0
        %2248 = vmatprep.mubr.f32.mxu0 0.0
        %2249 = vmatmul.mubr.f32.gmra.mxu0 %v2116
        %v2250 = vpop.f32.mrf.mxu0
        %v2251 = vadd.f32 0.0, %v2250
        %v2252 = vpop.f32.mrf.mxu0
        %2253 = vmatprep.mubr.f32.mxu0 0.0
        %2254 = vmatmul.mubr.f32.gmra.mxu0 %v2118
        %v2255 = vpop.f32.mrf.mxu0
        %v2256 = vadd.f32 0.0, %v2255
        %v2257 = vpop.f32.mrf.mxu0
        %2258 = vmatprep.mubr.f32.mxu0 0.0
        %2259 = vmatmul.mubr.f32.gmra.mxu0 %v2120
        %v2260 = vpop.f32.mrf.mxu0
        %v2261 = vadd.f32 0.0, %v2260
        %v2262 = vpop.f32.mrf.mxu0
        %2263 = vmatprep.mubr.f32.mxu0 0.0
        %2264 = vmatmul.mubr.f32.gmra.mxu0 %v2122
        %v2265 = vpop.f32.mrf.mxu0
        %v2266 = vadd.f32 0.0, %v2265
        %v2267 = vpop.f32.mrf.mxu0
        %2268 = vdwg.mxu0
        %v2269 = vadd.f32 %v2008, %v2206
        %v2270 = vadd.f32 %v2014, %v2211
        %v2271 = vadd.f32 %v2020, %v2216
        %v2272 = vadd.f32 %v2026, %v2221
        %v2273 = vadd.f32 %v2032, %v2226
        %v2274 = vadd.f32 %v2038, %v2231
        %v2275 = vadd.f32 %v2044, %v2236
        %v2276 = vadd.f32 %v2050, %v2241
        %v2277 = vadd.f32 %v2056, %v2246
        %v2278 = vadd.f32 %v2062, %v2251
        %v2279 = vadd.f32 %v2068, %v2256
        %v2280 = vadd.f32 %v2074, %v2261
        %v2281 = vadd.f32 %v2080, %v2266
        %2282 = vst [vmem:[%s332] sm:$0xff] %v1747
        %2283 = vst [vmem:[%s332 + $0x8] sm:$0xff] %v1748
        %2284 = vst [vmem:[%s332 + $0x10] sm:$0xff] %v1749
        %2285 = vst [vmem:[%s332 + $0x18] sm:$0xff] %v1750
        %2286 = vst [vmem:[%s332 + $0x20] sm:$0xff] %v1751
        %2287 = vst [vmem:[%s332 + $0x28] sm:$0xff] %v1752
        %2288 = vst [vmem:[%s332 + $0x30] sm:$0xff] %v1753
        %2289 = vst [vmem:[%s332 + $0x38] sm:$0xff] %v1754
        %2290 = vst [vmem:[%s332 + $0x40] sm:$0xff] %v1755
        %2291 = vst [vmem:[%s332 + $0x48] sm:$0xff] %v1756
        %2292 = vst [vmem:[%s332 + $0x50] sm:$0xff] %v1757
        %2293 = vst [vmem:[%s332 + $0x58] sm:$0xff] %v1758
        %2294 = vst [vmem:[%s332 + $0x60] sm:$0xff] %v1759
        %2295 = vst [vmem:[%s332 + $0x68] sm:$0xff] %v1760
        %2296 = vst [vmem:[%s332 + $0x70] sm:$0xff] %v1761
        %2297 = vst [vmem:[%s332 + $0x78] sm:$0xff] %v1762
        %2298 = vst [vmem:[%s332 + $0x80] sm:$0xff] %v1763
        %2299 = vst [vmem:[%s332 + $0x88] sm:$0xff] %v1764
        %2300 = vst [vmem:[%s332 + $0x90] sm:$0xff] %v1765
        %2301 = vst [vmem:[%s332 + $0x98] sm:$0xff] %v1766
        %2302 = vst [vmem:[%s332 + $0xa0] sm:$0xff] %v1767
        %2303 = vst [vmem:[%s332 + $0xa8] sm:$0xff] %v1768
        %2304 = vst [vmem:[%s332 + $0xb0] sm:$0xff] %v1769
        %2305 = vst [vmem:[%s332 + $0xb8] sm:$0xff] %v1770
        %2306 = vst [vmem:[%s332 + $0xc0] sm:$0xff] %v1771
        %2307 = vst [vmem:[%s332 + $0xc8] sm:$0xff] %v1772
        %2308 = vst [vmem:[%s332 + $0xd0] sm:$0xff] %v1773
        %2309 = vst [vmem:[%s332 + $0xd8] sm:$0xff] %v1774
        %2310 = vst [vmem:[%s332 + $0xe0] sm:$0xff] %v1775
        %2311 = vst [vmem:[%s332 + $0xe8] sm:$0xff] %v1776
        %2312 = vst [vmem:[%s332 + $0xf0] sm:$0xff] %v1777
        %2313 = vst [vmem:[%s332 + $0xf8] sm:$0xff] %v1778
        %2314 = vst [vmem:[%s332 + $0x100] sm:$0xff] %v1779
        %2315 = vst [vmem:[%s332 + $0x108] sm:$0xff] %v1780
        %2316 = vst [vmem:[%s332 + $0x110] sm:$0xff] %v1781
        %2317 = vst [vmem:[%s332 + $0x118] sm:$0xff] %v1782
        %2318 = vst [vmem:[%s332 + $0x120] sm:$0xff] %v1783
        %2319 = vst [vmem:[%s332 + $0x128] sm:$0xff] %v1784
        %2320 = vst [vmem:[%s332 + $0x130] sm:$0xff] %v1785
        %2321 = vst [vmem:[%s332 + $0x138] sm:$0xff] %v1786
        %2322 = vst [vmem:[%s332 + $0x140] sm:$0xff] %v1787
        %2323 = vst [vmem:[%s332 + $0x148] sm:$0xff] %v1788
        %2324 = vst [vmem:[%s332 + $0x150] sm:$0xff] %v1789
        %2325 = vst [vmem:[%s332 + $0x158] sm:$0xff] %v1790
        %2326 = vst [vmem:[%s332 + $0x160] sm:$0xff] %v1791
        %2327 = vst [vmem:[%s332 + $0x168] sm:$0xff] %v1792
        %2328 = vst [vmem:[%s332 + $0x170] sm:$0xff] %v1793
        %2329 = vst [vmem:[%s332 + $0x178] sm:$0xff] %v1794
        %2330 = vst [vmem:[%s332 + $0x180] sm:$0xff] %v1795
        %2331 = vst [vmem:[%s332 + $0x188] sm:$0xff] %v1796
        %2332 = vst [vmem:[%s332 + $0x190] sm:$0xff] %v1797
        %2333 = vst [vmem:[%s332 + $0x198] sm:$0xff] %v1798
        %2334 = vst [vmem:[%s339] sm:$0xff] %v2269
        %2335 = vst [vmem:[%s339 + $0x8] sm:$0xff] %v2270
        %2336 = vst [vmem:[%s339 + $0x10] sm:$0xff] %v2271
        %2337 = vst [vmem:[%s339 + $0x18] sm:$0xff] %v2272
        %2338 = vst [vmem:[%s339 + $0x20] sm:$0xff] %v2273
        %2339 = vst [vmem:[%s339 + $0x28] sm:$0xff] %v2274
        %2340 = vst [vmem:[%s339 + $0x30] sm:$0xff] %v2275
        %2341 = vst [vmem:[%s339 + $0x38] sm:$0xff] %v2276
        %2342 = vst [vmem:[%s339 + $0x40] sm:$0xff] %v2277
        %2343 = vst [vmem:[%s339 + $0x48] sm:$0xff] %v2278
        %2344 = vst [vmem:[%s339 + $0x50] sm:$0xff] %v2279
        %2345 = vst [vmem:[%s339 + $0x58] sm:$0xff] %v2280
        %2346 = vst [vmem:[%s339 + $0x60] sm:$0xff] %v2281
        %s2347 = sand.u32 %s166, 1
        %s2348 = scalar_lea.sflag [#allocation4], %s2347
        %s2349 = sand.u32 %s166, 1
        %s2350 = smul.addr %s2349, 416
        %s2351 = scalar_lea.vmem [#allocation5], %s2350
        %s2352 = sand.u32 %s194, 1
        %s2353 = scalar_lea.sflag [#allocation7], %s2352
        %s2354 = sand.u32 %s194, 1
        %s2355 = smul.addr %s2354, 104
        %s2356 = scalar_lea.vmem [#allocation6], %s2355
        // Predicated region
        $region45: #{tpu_custom_call.1} parent=39 // pred_check
          %p2357 = pneg %p176
        $region46: #{tpu_custom_call.1} parent=39 // pred_check_branch
          %2359 = sbr.rel (%p2357) target = $region48
        $region47: #{tpu_custom_call.1} parent=39 // pred_region
          %s2360 = smul.u32 13, %s30
          %s2362 = ssub.s32 6656, 6656
          %2363 = vsyncadd %s2348, %s2362
          %s2364 = smul.addr %s2360, 4
          %s2365 = smul.addr %s29, 52
          %s2366 = sadd.s32 %s2364, %s2365
          %s2367 = smul.addr %s2366, 128
          %s2368 = scalar_lea.hbm %s5, %s2367
          %s2369 = sshll.u32 %s2351, 4
          %s2370 = int_to_ptr.vmem [resolvable:$true] %s2369
          %2375 = dma.vmem_to_hbm [thread:$0]  %s2370, 6656, %s2368, %s2348, 512, 512, 32
        $region48: #{tpu_custom_call.1} parent=39 // pred_fallthru
          _
        // Predicated region
        $region49: #{tpu_custom_call.1} parent=39 // pred_check
          %p2376 = pneg %p204
        $region50: #{tpu_custom_call.1} parent=39 // pred_check_branch
          %2378 = sbr.rel (%p2376) target = $region52
        $region51: #{tpu_custom_call.1} parent=39 // pred_region
          %s2379 = smul.u32 13, %s30
          %s2381 = ssub.s32 1664, 1664
          %2382 = vsyncadd %s2353, %s2381
          %s2383 = smul.addr %s29, 13
          %s2384 = sadd.s32 %s2379, %s2383
          %s2385 = smul.addr %s2384, 128
          %s2386 = scalar_lea.hbm %s6, %s2385
          %s2387 = sshll.u32 %s2356, 4
          %s2388 = int_to_ptr.vmem [resolvable:$true] %s2387
          %2393 = dma.vmem_to_hbm [thread:$0]  %s2388, 1664, %s2386, %s2353, 128, 128, 8
        $region52: #{tpu_custom_call.1} parent=39 // pred_fallthru
          _
      $region40: #{tpu_custom_call.1} parent=5 // pred_fallthru
        _
      %p2394 = scmp.le.s32.totalorder 2, %s20
      // Predicated region
      $region53: #{tpu_custom_call.1} parent=5 // pred_check
        %p2395 = pneg %p2394
      $region54: #{tpu_custom_call.1} parent=5 // pred_check_branch
        %2397 = sbr.rel (%p2395) target = $region56
      $region55: #{tpu_custom_call.1} parent=5 // pred_region
        %s2398 = ssub.s32 %s20, 2
        // Predicated region
        $region57: #{tpu_custom_call.1} parent=55 // pred_check
          %p2399 = pneg %p182
        $region58: #{tpu_custom_call.1} parent=55 // pred_check_branch
          %2401 = sbr.rel (%p2399) target = $region60
        $region59: #{tpu_custom_call.1} parent=55 // pred_region
          %s2402 = sand.u32 %s167, 1
          %s2403 = scalar_lea.sflag [#allocation4], %s2402
          %s2404 = sand.u32 %s167, 1
          %s2405 = smul.addr %s2404, 416
          %s2406 = scalar_lea.vmem [#allocation5], %s2405
          %2407 = dma.done %s2403, 6656
        $region60: #{tpu_custom_call.1} parent=55 // pred_fallthru
          _
        // Predicated region
        $region61: #{tpu_custom_call.1} parent=55 // pred_check
          %p2408 = pneg %p210
        $region62: #{tpu_custom_call.1} parent=55 // pred_check_branch
          %2410 = sbr.rel (%p2408) target = $region64
        $region63: #{tpu_custom_call.1} parent=55 // pred_region
          %s2411 = sand.u32 %s195, 1
          %s2412 = scalar_lea.sflag [#allocation7], %s2411
          %s2413 = sand.u32 %s195, 1
          %s2414 = smul.addr %s2413, 104
          %s2415 = scalar_lea.vmem [#allocation6], %s2414
          %2416 = dma.done %s2412, 1664
        $region64: #{tpu_custom_call.1} parent=55 // pred_fallthru
          _
      $region56: #{tpu_custom_call.1} parent=5 // pred_fallthru
        _
    $region6: #{tpu_custom_call.1} parent=1 // loop_footer
      %s24 = sadd.s32 1, %s20
    $region7: #{tpu_custom_call.1} parent=1 // loop_footer_branch
      %19 = sbr.rel target = $region3
    $region8: #{tpu_custom_call.1} parent=1 // loop_exit
      _
    %2417 = vsyncpa [#allocation3], 1
    %s2418 = scalar_lea.sflag [#allocation3], 1
    %2419 = vsyncpa %s2418, 1
    %2420 = vsyncpa [#allocation4], 1
    %s2421 = scalar_lea.sflag [#allocation4], 1
    %2422 = vsyncpa %s2421, 1
    %2423 = vsyncpa [#allocation7], 1
    %s2424 = scalar_lea.sflag [#allocation7], 1
    %2425 = vsyncpa %s2424, 1

</llo_original>
